<compile_context>
chip_gen: v7x
topology: tpu7x:2x2x1
jax: 0.10.0
libtpu: 0.0.40
codegen_flags: <defaults>
</compile_context>

<pallas_src>
import functools

import jax
import jax.numpy as jnp
from jax import lax
from jax.experimental import pallas as pl
from jax.experimental.pallas import tpu as pltpu


def _round_up(x, m):
    return ((x + m - 1) // m) * m


def _pick_batch_block(n, max_nb=8):
    """Largest divisor of n that is <= max_nb and still leaves >= 2 grid steps."""
    best = 1
    for d in range(1, min(n, max_nb) + 1):
        if n % d == 0 and n // d >= 2:
            best = d
    return best


def _conv_block_kernel(x_ref, w1_ref, b1_ref, w2_ref, b2_ref, o_ref,
                       xstk_ref, hpad_ref, hstk_ref, *,
                       fw, pad, l1, l2, ls1, ls2, lh, nb, lchunk):
    """Fused Conv1d+ReLU -> Conv1d+ReLU for a block of `nb` batch elements.

    Layout is (C, L): L maps to the 128-wide lane axis.  Each conv stage is a
    single MXU matmul against a stacked (fw*C, L) RHS built in VMEM scratch.
    The intermediate activation h never leaves VMEM.
    """
    cdt = xstk_ref.dtype
    cin = x_ref.shape[1]
    cout = hpad_ref.shape[0]

    # Folded weights / biases (index_map is constant -> same data every step).
    w1f = w1_ref[...]            # (Cout, fw*Cin)
    w2f = w2_ref[...]            # (Cout, fw*Cout)
    b1v = b1_ref[...]            # (Cout, 1), f32
    b2v = b2_ref[...]            # (Cout, 1), f32

    # Zero the persistent halo columns of the intermediate scratch once per
    # grid step (cheap; see file header for why not once at program_id==0).
    if pad > 0:
        hpad_ref[:, 0:pad] = jnp.zeros((cout, pad), cdt)
    if lh > pad + ls1:
        hpad_ref[:, pad + ls1:lh] = jnp.zeros((cout, lh - pad - ls1), cdt)

    for b in range(nb):          # static unroll over the batch block
        # -------- stage 1: conv1 + ReLU (single matmul, K = fw*Cin) --------
        # Stacked RHS: row-block k holds x_padded shifted by k along lanes.
        for k in range(fw):
            xstk_ref[k * cin:(k + 1) * cin, :] = x_ref[b, :, k:k + ls1]

        for j0 in range(0, ls1, lchunk):
            jw = min(lchunk, ls1 - j0)
            acc = jnp.dot(w1f, xstk_ref[:, j0:j0 + jw],
                          preferred_element_type=jnp.float32) + b1v
            h = jnp.maximum(acc, 0.0)                       # f32 epilogue
            if j0 + jw > l1:
                # Columns >= l1 are partial windows (garbage); zero them so
                # they act as conv2's right zero-padding.
                col = lax.broadcasted_iota(jnp.int32, (cout, jw), 1) + j0
                h = jnp.where(col < l1, h, 0.0)
            hpad_ref[:, pad + j0:pad + j0 + jw] = h.astype(cdt)

        # -------- stage 2: conv2 + ReLU (single matmul, K = fw*Cout) --------
        for k in range(fw):
            hstk_ref[k * cout:(k + 1) * cout, :] = hpad_ref[:, k:k + ls2]

        for j0 in range(0, ls2, lchunk):
            jw = min(lchunk, ls2 - j0)
            acc = jnp.dot(w2f, hstk_ref[:, j0:j0 + jw],
                          preferred_element_type=jnp.float32) + b2v
            o_ref[b, :, j0:j0 + jw] = jnp.maximum(acc, 0.0).astype(o_ref.dtype)


def conv_block_forward(x_ncl, params, filter_width, *, use_bf16=False,
                       out_dtype=None):
    """ConvBlock.forward.  x_ncl: (N, C_in, L) (PyTorch layout) -> (N, C_out, L_out)."""
    fw = filter_width
    pad = (fw - 1) // 2 if fw % 2 == 1 else fw // 2
    n, cin, l = x_ncl.shape
    cout = params["w1"].shape[0]

    l1 = l + 2 * pad - fw + 1            # conv1 true output length
    l2 = l1 + 2 * pad - fw + 1           # conv2 true output length
    ls1 = _round_up(l1, 128)             # stage-1 lane width (128-dense)
    ls2 = _round_up(l2, 128)             # stage-2 / output lane width
    lx = _round_up(ls1 + fw - 1, 128)    # padded-x lane width (left halo included)
    lh = _round_up(max(ls2 + fw - 1, pad + ls1), 128)  # intermediate scratch width
    lchunk = 512                         # bounds f32 accumulator vreg pressure

    cdt = jnp.bfloat16 if use_bf16 else jnp.float32
    if out_dtype is None:
        out_dtype = jnp.bfloat16 if use_bf16 else jnp.float32

    # Pre-pad x once in the wrapper: `pad` left-halo zeros + zeros up to lx.
    x_p = jnp.pad(x_ncl.astype(cdt), ((0, 0), (0, 0), (pad, lx - pad - l)))

    # Folded weights: w[o, c, k] -> w_f[o, k*Cin + c]  (matches stacked-RHS rows).
    w1f = jnp.transpose(params["w1"], (0, 2, 1)).reshape(cout, fw * cin).astype(cdt)
    w2f = jnp.transpose(params["w2"], (0, 2, 1)).reshape(cout, fw * cout).astype(cdt)
    # Biases stay f32 (f32 VPU epilogue even when MXU inputs are bf16).
    b1 = params["b1"].reshape(cout, 1).astype(jnp.float32)
    b2 = params["b2"].reshape(cout, 1).astype(jnp.float32)

    nb = _pick_batch_block(n)
    grid = (n // nb,)

    kernel = functools.partial(_conv_block_kernel, fw=fw, pad=pad, l1=l1, l2=l2,
                               ls1=ls1, ls2=ls2, lh=lh, nb=nb, lchunk=lchunk)

    # VMEM budget: double-buffered x/out blocks, single-buffered weights,
    # stacked/intermediate scratch, f32 chunk accumulators, plus headroom;
    # capped at 75% of this generation's physical VMEM (64 MiB on v7x).
    cb = 2 if use_bf16 else 4
    ob = jnp.dtype(out_dtype).itemsize
    est = (2 * nb * cin * lx * cb
           + 2 * nb * cout * ls2 * ob
           + cout * fw * (cin + cout) * cb + 2 * cout * 4
           + (fw * cin * ls1 + cout * lh + fw * cout * ls2) * cb
           + 2 * cout * min(lchunk, ls1) * 4)
    try:
        phys = pltpu.get_tpu_info().vmem_capacity_bytes
    except Exception:
        phys = 128 << 20
    vmem_limit = int(min(max(2 * est + (4 << 20), 32 << 20), int(0.75 * phys)))

    def make_call(use_buffered):
        def const_spec(shape):
            if use_buffered:
                return pl.BlockSpec(shape, lambda i: (0,) * len(shape),
                                    pipeline_mode=pl.Buffered(1))
            return pl.BlockSpec(shape, lambda i: (0,) * len(shape))

        return pl.pallas_call(
            kernel,
            out_shape=jax.ShapeDtypeStruct((n, cout, ls2), out_dtype),
            grid_spec=pltpu.PrefetchScalarGridSpec(
                num_scalar_prefetch=0,
                grid=grid,
                in_specs=[
                    pl.BlockSpec((nb, cin, lx), lambda i: (i, 0, 0)),
                    const_spec((cout, fw * cin)),
                    const_spec((cout, 1)),
                    const_spec((cout, fw * cout)),
                    const_spec((cout, 1)),
                ],
                out_specs=pl.BlockSpec((nb, cout, ls2), lambda i: (i, 0, 0)),
                scratch_shapes=[
                    pltpu.VMEM((fw * cin, ls1), cdt),    # stacked conv1 RHS
                    pltpu.VMEM((cout, lh), cdt),         # padded intermediate h (VMEM only)
                    pltpu.VMEM((fw * cout, ls2), cdt),   # stacked conv2 RHS
                ],
            ),
            compiler_params=pltpu.CompilerParams(
                dimension_semantics=("parallel",),
                vmem_limit_bytes=vmem_limit,
            ),
        )

    args = (x_p, w1f, b1, w2f, b2)
    try:
        out_full = make_call(hasattr(pl, "Buffered"))(*args)
    except Exception:
        # Fallback if single-buffered constant operands are not supported.
        out_full = make_call(False)(*args)

    return out_full[:, :, :l2]


def init_params(key, in_channels, out_channels, filter_width):
    """Deterministic synthetic init matching nn.Conv1d parameter shapes."""
    k1, k2, k3, k4 = jax.random.split(key, 4)
    s1 = 1.0 / (in_channels * filter_width) ** 0.5
    s2 = 1.0 / (out_channels * filter_width) ** 0.5
    return {
        "w1": jax.random.uniform(k1, (out_channels, in_channels, filter_width),
                                 jnp.float32, -s1, s1),
        "b1": jax.random.uniform(k2, (out_channels,), jnp.float32, -s1, s1),
        "w2": jax.random.uniform(k3, (out_channels, out_channels, filter_width),
                                 jnp.float32, -s2, s2),
        "b2": jax.random.uniform(k4, (out_channels,), jnp.float32, -s2, s2),
    }


def _reference(x_ncl, params, filter_width):
    """Pure-JAX reference using lax.conv_general_dilated (matches nn.Conv1d)."""
    pad = (filter_width - 1) // 2 if filter_width % 2 == 1 else filter_width // 2

    def conv(x, w, b):
        y = lax.conv_general_dilated(
            x, w, window_strides=(1,), padding=[(pad, pad)],
            dimension_numbers=("NCH", "OIH", "NCH"))
        return jnp.maximum(y + b[None, :, None], 0.0)

    h = conv(x_ncl, params["w1"], params["b1"])
    return conv(h, params["w2"], params["b2"])


if __name__ == "__main__":
    batch, in_channels, out_channels, length = 2, 4, 8, 16

    key = jax.random.PRNGKey(0)
    kx, kp = jax.random.split(key)
    x = jax.random.normal(kx, (batch, in_channels, length), jnp.float32)

    # --- odd filter width, f32 path (strict check) ---
    fw = 3
    params = init_params(kp, in_channels, out_channels, fw)
    out = jax.block_until_ready(conv_block_forward(x, params, fw))
    ref = jax.block_until_ready(_reference(x, params, fw))
    assert out.shape == ref.shape, (out.shape, ref.shape)
    assert jnp.allclose(out, ref, atol=1e-5, rtol=1e-5), float(
        jnp.max(jnp.abs(out - ref)))

    # --- odd filter width, bf16 MXU inputs + bf16 output (loose check) ---
    out_bf16 = jax.block_until_ready(conv_block_forward(x, params, fw, use_bf16=True))
    assert out_bf16.shape == ref.shape
    assert jnp.allclose(out_bf16.astype(jnp.float32), ref, atol=1e-1, rtol=1e-1), float(
        jnp.max(jnp.abs(out_bf16.astype(jnp.float32) - ref)))

    # --- even filter width (asymmetric: L_out = L + 2 after two convs), f32 ---
    fw_even = 4
    params_even = init_params(kp, in_channels, out_channels, fw_even)
    out_even = jax.block_until_ready(conv_block_forward(x, params_even, fw_even))
    ref_even = jax.block_until_ready(_reference(x, params_even, fw_even))
    assert out_even.shape == ref_even.shape, (out_even.shape, ref_even.shape)
    assert jnp.allclose(out_even, ref_even, atol=1e-5, rtol=1e-5), float(
        jnp.max(jnp.abs(out_even - ref_even)))

    print("KERNEL_OK")
</pallas_src>

<mosaic_0001>
module attributes {stable_mosaic.version = 11 : i64} {
  func.func @_conv_block_kernel(%arg0: i32, %arg1: memref<1x4x256xf32, #tpu.memory_space<vmem>>, %arg2: memref<8x12xf32, #tpu.memory_space<vmem>>, %arg3: memref<8x1xf32, #tpu.memory_space<vmem>>, %arg4: memref<8x24xf32, #tpu.memory_space<vmem>>, %arg5: memref<8x1xf32, #tpu.memory_space<vmem>>, %arg6: memref<1x8x128xf32, #tpu.memory_space<vmem>>, %arg7: memref<12x128xf32, #tpu.memory_space<vmem>>, %arg8: memref<8x256xf32, #tpu.memory_space<vmem>>, %arg9: memref<24x128xf32, #tpu.memory_space<vmem>>) attributes {dimension_semantics = [#tpu.dimension_semantics<parallel>], iteration_bounds = array<i64: 2>, scalar_prefetch = 0 : i64, scratch_operands = 3 : i64, tpu.core_type = #tpu.core_type<tc>, window_params = [{transform_indices = @transform_0, window_bounds = array<i64: 1, 4, 256>}, {pipeline_mode = #tpu.pipeline_mode<synchronous>, transform_indices = @transform_1, window_bounds = array<i64: 8, 12>}, {pipeline_mode = #tpu.pipeline_mode<synchronous>, transform_indices = @transform_2, window_bounds = array<i64: 8, 1>}, {pipeline_mode = #tpu.pipeline_mode<synchronous>, transform_indices = @transform_3, window_bounds = array<i64: 8, 24>}, {pipeline_mode = #tpu.pipeline_mode<synchronous>, transform_indices = @transform_4, window_bounds = array<i64: 8, 1>}, {transform_indices = @transform_5, window_bounds = array<i64: 1, 8, 128>}]} {
    %c0 = arith.constant 0 : index
    %c0_0 = arith.constant 0 : index
    %0 = vector.load %arg2[%c0, %c0_0] : memref<8x12xf32, #tpu.memory_space<vmem>>, vector<8x12xf32>
    %c0_1 = arith.constant 0 : index
    %c0_2 = arith.constant 0 : index
    %1 = vector.load %arg4[%c0_1, %c0_2] : memref<8x24xf32, #tpu.memory_space<vmem>>, vector<8x24xf32>
    %c0_3 = arith.constant 0 : index
    %c0_4 = arith.constant 0 : index
    %2 = vector.load %arg3[%c0_3, %c0_4] : memref<8x1xf32, #tpu.memory_space<vmem>>, vector<8x1xf32>
    %c0_5 = arith.constant 0 : index
    %c0_6 = arith.constant 0 : index
    %3 = vector.load %arg5[%c0_5, %c0_6] : memref<8x1xf32, #tpu.memory_space<vmem>>, vector<8x1xf32>
    %cst = arith.constant 0.000000e+00 : f32
    %4 = vector.broadcast %cst : f32 to vector<8x1xf32>
    %c0_7 = arith.constant 0 : index
    %c0_8 = arith.constant 0 : index
    %5 = vector.load %arg8[%c0_7, %c0_8] : memref<8x256xf32, #tpu.memory_space<vmem>>, vector<8x1xf32>
    tpu.vector_store %arg8[%c0_7, %c0_8], %4 {strides = array<i32>} : memref<8x256xf32, #tpu.memory_space<vmem>>, vector<8x1xf32>,
    %cst_9 = arith.constant 0.000000e+00 : f32
    %6 = vector.broadcast %cst_9 : f32 to vector<8x127xf32>
    %c0_10 = arith.constant 0 : index
    %c129 = arith.constant 129 : index
    %7 = vector.load %arg8[%c0_10, %c129] : memref<8x256xf32, #tpu.memory_space<vmem>>, vector<8x127xf32>
    tpu.vector_store %arg8[%c0_10, %c129], %6 {strides = array<i32>} : memref<8x256xf32, #tpu.memory_space<vmem>>, vector<8x127xf32>,
    %c0_11 = arith.constant 0 : index
    %c0_12 = arith.constant 0 : index
    %c0_13 = arith.constant 0 : index
    %8 = vector.load %arg1[%c0_11, %c0_12, %c0_13] : memref<1x4x256xf32, #tpu.memory_space<vmem>>, vector<1x4x128xf32>
    %9 = vector.shape_cast %8 : vector<1x4x128xf32> to vector<4x128xf32>
    %c0_14 = arith.constant 0 : index
    %c0_15 = arith.constant 0 : index
    %10 = vector.load %arg7[%c0_14, %c0_15] : memref<12x128xf32, #tpu.memory_space<vmem>>, vector<4x128xf32>
    tpu.vector_store %arg7[%c0_14, %c0_15], %9 {strides = array<i32>} : memref<12x128xf32, #tpu.memory_space<vmem>>, vector<4x128xf32>,
    %c0_16 = arith.constant 0 : index
    %c0_17 = arith.constant 0 : index
    %c1 = arith.constant 1 : index
    %11 = vector.load %arg1[%c0_16, %c0_17, %c1] : memref<1x4x256xf32, #tpu.memory_space<vmem>>, vector<1x4x128xf32>
    %12 = vector.shape_cast %11 : vector<1x4x128xf32> to vector<4x128xf32>
    %c4 = arith.constant 4 : index
    %c0_18 = arith.constant 0 : index
    %13 = vector.load %arg7[%c4, %c0_18] : memref<12x128xf32, #tpu.memory_space<vmem>>, vector<4x128xf32>
    tpu.vector_store %arg7[%c4, %c0_18], %12 {strides = array<i32>} : memref<12x128xf32, #tpu.memory_space<vmem>>, vector<4x128xf32>,
    %c0_19 = arith.constant 0 : index
    %c0_20 = arith.constant 0 : index
    %c2 = arith.constant 2 : index
    %14 = vector.load %arg1[%c0_19, %c0_20, %c2] : memref<1x4x256xf32, #tpu.memory_space<vmem>>, vector<1x4x128xf32>
    %15 = vector.shape_cast %14 : vector<1x4x128xf32> to vector<4x128xf32>
    %c8 = arith.constant 8 : index
    %c0_21 = arith.constant 0 : index
    %16 = vector.load %arg7[%c8, %c0_21] : memref<12x128xf32, #tpu.memory_space<vmem>>, vector<4x128xf32>
    tpu.vector_store %arg7[%c8, %c0_21], %15 {strides = array<i32>} : memref<12x128xf32, #tpu.memory_space<vmem>>, vector<4x128xf32>,
    %c0_22 = arith.constant 0 : index
    %c0_23 = arith.constant 0 : index
    %17 = vector.load %arg7[%c0_22, %c0_23] : memref<12x128xf32, #tpu.memory_space<vmem>>, vector<12x128xf32>
    %cst_24 = arith.constant dense<0.000000e+00> : vector<8x128xf32>
    %18 = tpu.matmul %0, %17, %cst_24 {dimension_numbers = #tpu.dot_dimension_numbers<[1], [0], [0], [1], [0, 0, 1, 1], [], []>} : vector<8x12xf32>, vector<12x128xf32>, vector<8x128xf32> -> vector<8x128xf32>
    %19 = vector.broadcast %2 : vector<8x1xf32> to vector<8x128xf32>
    %20 = arith.addf %18, %19 : vector<8x128xf32>
    %cst_25 = arith.constant 0.000000e+00 : f32
    %21 = vector.broadcast %cst_25 : f32 to vector<8x128xf32>
    %22 = arith.maximumf %20, %21 : vector<8x128xf32>
    %23 = tpu.iota {dimensions = array<i32: 1>} : vector<8x128xi32>
    %c0_i32 = arith.constant 0 : i32
    %24 = vector.broadcast %c0_i32 : i32 to vector<8x128xi32>
    %25 = arith.addi %23, %24 : vector<8x128xi32>
    %c16_i32 = arith.constant 16 : i32
    %26 = vector.broadcast %c16_i32 : i32 to vector<8x128xi32>
    %27 = arith.cmpi slt, %25, %26 : vector<8x128xi32>
    %cst_26 = arith.constant 0.000000e+00 : f32
    %28 = vector.broadcast %cst_26 : f32 to vector<8x128xf32>
    %29 = arith.select %27, %22, %28 : vector<8x128xi1>, vector<8x128xf32>
    %c0_27 = arith.constant 0 : index
    %c1_28 = arith.constant 1 : index
    %30 = vector.load %arg8[%c0_27, %c1_28] : memref<8x256xf32, #tpu.memory_space<vmem>>, vector<8x128xf32>
    tpu.vector_store %arg8[%c0_27, %c1_28], %29 {strides = array<i32>} : memref<8x256xf32, #tpu.memory_space<vmem>>, vector<8x128xf32>,
    %c0_29 = arith.constant 0 : index
    %c0_30 = arith.constant 0 : index
    %31 = vector.load %arg8[%c0_29, %c0_30] : memref<8x256xf32, #tpu.memory_space<vmem>>, vector<8x128xf32>
    %c0_31 = arith.constant 0 : index
    %c0_32 = arith.constant 0 : index
    %32 = vector.load %arg9[%c0_31, %c0_32] : memref<24x128xf32, #tpu.memory_space<vmem>>, vector<8x128xf32>
    tpu.vector_store %arg9[%c0_31, %c0_32], %31 {strides = array<i32>} : memref<24x128xf32, #tpu.memory_space<vmem>>, vector<8x128xf32>,
    %c0_33 = arith.constant 0 : index
    %c1_34 = arith.constant 1 : index
    %33 = vector.load %arg8[%c0_33, %c1_34] : memref<8x256xf32, #tpu.memory_space<vmem>>, vector<8x128xf32>
    %c8_35 = arith.constant 8 : index
    %c0_36 = arith.constant 0 : index
    %34 = vector.load %arg9[%c8_35, %c0_36] : memref<24x128xf32, #tpu.memory_space<vmem>>, vector<8x128xf32>
    tpu.vector_store %arg9[%c8_35, %c0_36], %33 {strides = array<i32>} : memref<24x128xf32, #tpu.memory_space<vmem>>, vector<8x128xf32>,
    %c0_37 = arith.constant 0 : index
    %c2_38 = arith.constant 2 : index
    %35 = vector.load %arg8[%c0_37, %c2_38] : memref<8x256xf32, #tpu.memory_space<vmem>>, vector<8x128xf32>
    %c16 = arith.constant 16 : index
    %c0_39 = arith.constant 0 : index
    %36 = vector.load %arg9[%c16, %c0_39] : memref<24x128xf32, #tpu.memory_space<vmem>>, vector<8x128xf32>
    tpu.vector_store %arg9[%c16, %c0_39], %35 {strides = array<i32>} : memref<24x128xf32, #tpu.memory_space<vmem>>, vector<8x128xf32>,
    %c0_40 = arith.constant 0 : index
    %c0_41 = arith.constant 0 : index
    %37 = vector.load %arg9[%c0_40, %c0_41] : memref<24x128xf32, #tpu.memory_space<vmem>>, vector<24x128xf32>
    %cst_42 = arith.constant dense<0.000000e+00> : vector<8x128xf32>
    %38 = tpu.matmul %1, %37, %cst_42 {dimension_numbers = #tpu.dot_dimension_numbers<[1], [0], [0], [1], [0, 0, 1, 1], [], []>} : vector<8x24xf32>, vector<24x128xf32>, vector<8x128xf32> -> vector<8x128xf32>
    %39 = vector.broadcast %3 : vector<8x1xf32> to vector<8x128xf32>
    %40 = arith.addf %38, %39 : vector<8x128xf32>
    %cst_43 = arith.constant 0.000000e+00 : f32
    %41 = vector.broadcast %cst_43 : f32 to vector<8x128xf32>
    %42 = arith.maximumf %40, %41 : vector<8x128xf32>
    %c0_44 = arith.constant 0 : index
    %c0_45 = arith.constant 0 : index
    %c0_46 = arith.constant 0 : index
    %43 = vector.load %arg6[%c0_44, %c0_45, %c0_46] : memref<1x8x128xf32, #tpu.memory_space<vmem>>, vector<1x8x128xf32>
    %44 = vector.shape_cast %43 : vector<1x8x128xf32> to vector<8x128xf32>
    %45 = vector.shape_cast %42 : vector<8x128xf32> to vector<1x8x128xf32>
    tpu.vector_store %arg6[%c0_44, %c0_45, %c0_46], %45 {strides = array<i32>} : memref<1x8x128xf32, #tpu.memory_space<vmem>>, vector<1x8x128xf32>,
    return
  }
  func.func @transform_0(%arg0: i32) -> (i32, i32, i32) {
    %c0_i32 = arith.constant 0 : i32
    %c0_i32_0 = arith.constant 0 : i32
    %c0_i32_1 = arith.constant 0 : i32
    return %arg0, %c0_i32, %c0_i32_0 : i32, i32, i32
  }
  func.func @transform_1(%arg0: i32) -> (i32, i32) {
    %c0_i32 = arith.constant 0 : i32
    %c0_i32_0 = arith.constant 0 : i32
    %c0_i32_1 = arith.constant 0 : i32
    return %c0_i32, %c0_i32_0 : i32, i32
  }
  func.func @transform_2(%arg0: i32) -> (i32, i32) {
    %c0_i32 = arith.constant 0 : i32
    %c0_i32_0 = arith.constant 0 : i32
    %c0_i32_1 = arith.constant 0 : i32
    return %c0_i32, %c0_i32_0 : i32, i32
  }
  func.func @transform_3(%arg0: i32) -> (i32, i32) {
    %c0_i32 = arith.constant 0 : i32
    %c0_i32_0 = arith.constant 0 : i32
    %c0_i32_1 = arith.constant 0 : i32
    return %c0_i32, %c0_i32_0 : i32, i32
  }
  func.func @transform_4(%arg0: i32) -> (i32, i32) {
    %c0_i32 = arith.constant 0 : i32
    %c0_i32_0 = arith.constant 0 : i32
    %c0_i32_1 = arith.constant 0 : i32
    return %c0_i32, %c0_i32_0 : i32, i32
  }
  func.func @transform_5(%arg0: i32) -> (i32, i32, i32) {
    %c0_i32 = arith.constant 0 : i32
    %c0_i32_0 = arith.constant 0 : i32
    %c0_i32_1 = arith.constant 0 : i32
    return %arg0, %c0_i32, %c0_i32_0 : i32, i32, i32
  }
}

module attributes {stable_mosaic.version = 11 : i64} {
  func.func @_conv_block_kernel(%arg0: i32, %arg1: memref<1x4x256xf32, #tpu.memory_space<vmem>>, %arg2: memref<8x12xf32, #tpu.memory_space<vmem>>, %arg3: memref<8x1xf32, #tpu.memory_space<vmem>>, %arg4: memref<8x24xf32, #tpu.memory_space<vmem>>, %arg5: memref<8x1xf32, #tpu.memory_space<vmem>>, %arg6: memref<1x8x128xf32, #tpu.memory_space<vmem>>, %arg7: memref<12x128xf32, #tpu.memory_space<vmem>>, %arg8: memref<8x256xf32, #tpu.memory_space<vmem>>, %arg9: memref<24x128xf32, #tpu.memory_space<vmem>>) attributes {dimension_semantics = [#tpu.dimension_semantics<parallel>], iteration_bounds = array<i64: 2>, scalar_prefetch = 0 : i64, scratch_operands = 3 : i64, tpu.core_type = #tpu.core_type<tc>, window_params = [{transform_indices = @transform_0, window_bounds = array<i64: 1, 4, 256>}, {pipeline_mode = #tpu.pipeline_mode<synchronous>, transform_indices = @transform_1, window_bounds = array<i64: 8, 12>}, {pipeline_mode = #tpu.pipeline_mode<synchronous>, transform_indices = @transform_2, window_bounds = array<i64: 8, 1>}, {pipeline_mode = #tpu.pipeline_mode<synchronous>, transform_indices = @transform_3, window_bounds = array<i64: 8, 24>}, {pipeline_mode = #tpu.pipeline_mode<synchronous>, transform_indices = @transform_4, window_bounds = array<i64: 8, 1>}, {transform_indices = @transform_5, window_bounds = array<i64: 1, 8, 128>}]} {
    %c0 = arith.constant 0 : index
    %c0_0 = arith.constant 0 : index
    %0 = vector.load %arg2[%c0, %c0_0] : memref<8x12xf32, #tpu.memory_space<vmem>>, vector<8x12xf32>
    %c0_1 = arith.constant 0 : index
    %c0_2 = arith.constant 0 : index
    %1 = vector.load %arg4[%c0_1, %c0_2] : memref<8x24xf32, #tpu.memory_space<vmem>>, vector<8x24xf32>
    %c0_3 = arith.constant 0 : index
    %c0_4 = arith.constant 0 : index
    %2 = vector.load %arg3[%c0_3, %c0_4] : memref<8x1xf32, #tpu.memory_space<vmem>>, vector<8x1xf32>
    %c0_5 = arith.constant 0 : index
    %c0_6 = arith.constant 0 : index
    %3 = vector.load %arg5[%c0_5, %c0_6] : memref<8x1xf32, #tpu.memory_space<vmem>>, vector<8x1xf32>
    %cst = arith.constant 0.000000e+00 : f32
    %4 = vector.broadcast %cst : f32 to vector<8x1xf32>
    %c0_7 = arith.constant 0 : index
    %c0_8 = arith.constant 0 : index
    %5 = vector.load %arg8[%c0_7, %c0_8] : memref<8x256xf32, #tpu.memory_space<vmem>>, vector<8x1xf32>
    tpu.vector_store %arg8[%c0_7, %c0_8], %4 {strides = array<i32>} : memref<8x256xf32, #tpu.memory_space<vmem>>, vector<8x1xf32>,
    %cst_9 = arith.constant 0.000000e+00 : f32
    %6 = vector.broadcast %cst_9 : f32 to vector<8x127xf32>
    %c0_10 = arith.constant 0 : index
    %c129 = arith.constant 129 : index
    %7 = vector.load %arg8[%c0_10, %c129] : memref<8x256xf32, #tpu.memory_space<vmem>>, vector<8x127xf32>
    tpu.vector_store %arg8[%c0_10, %c129], %6 {strides = array<i32>} : memref<8x256xf32, #tpu.memory_space<vmem>>, vector<8x127xf32>,
    %c0_11 = arith.constant 0 : index
    %c0_12 = arith.constant 0 : index
    %c0_13 = arith.constant 0 : index
    %8 = vector.load %arg1[%c0_11, %c0_12, %c0_13] : memref<1x4x256xf32, #tpu.memory_space<vmem>>, vector<1x4x128xf32>
    %9 = vector.shape_cast %8 : vector<1x4x128xf32> to vector<4x128xf32>
    %c0_14 = arith.constant 0 : index
    %c0_15 = arith.constant 0 : index
    %10 = vector.load %arg7[%c0_14, %c0_15] : memref<12x128xf32, #tpu.memory_space<vmem>>, vector<4x128xf32>
    tpu.vector_store %arg7[%c0_14, %c0_15], %9 {strides = array<i32>} : memref<12x128xf32, #tpu.memory_space<vmem>>, vector<4x128xf32>,
    %c0_16 = arith.constant 0 : index
    %c0_17 = arith.constant 0 : index
    %c1 = arith.constant 1 : index
    %11 = vector.load %arg1[%c0_16, %c0_17, %c1] : memref<1x4x256xf32, #tpu.memory_space<vmem>>, vector<1x4x128xf32>
    %12 = vector.shape_cast %11 : vector<1x4x128xf32> to vector<4x128xf32>
    %c4 = arith.constant 4 : index
    %c0_18 = arith.constant 0 : index
    %13 = vector.load %arg7[%c4, %c0_18] : memref<12x128xf32, #tpu.memory_space<vmem>>, vector<4x128xf32>
    tpu.vector_store %arg7[%c4, %c0_18], %12 {strides = array<i32>} : memref<12x128xf32, #tpu.memory_space<vmem>>, vector<4x128xf32>,
    %c0_19 = arith.constant 0 : index
    %c0_20 = arith.constant 0 : index
    %c2 = arith.constant 2 : index
    %14 = vector.load %arg1[%c0_19, %c0_20, %c2] : memref<1x4x256xf32, #tpu.memory_space<vmem>>, vector<1x4x128xf32>
    %15 = vector.shape_cast %14 : vector<1x4x128xf32> to vector<4x128xf32>
    %c8 = arith.constant 8 : index
    %c0_21 = arith.constant 0 : index
    %16 = vector.load %arg7[%c8, %c0_21] : memref<12x128xf32, #tpu.memory_space<vmem>>, vector<4x128xf32>
    tpu.vector_store %arg7[%c8, %c0_21], %15 {strides = array<i32>} : memref<12x128xf32, #tpu.memory_space<vmem>>, vector<4x128xf32>,
    %c0_22 = arith.constant 0 : index
    %c0_23 = arith.constant 0 : index
    %17 = vector.load %arg7[%c0_22, %c0_23] : memref<12x128xf32, #tpu.memory_space<vmem>>, vector<12x128xf32>
    %cst_24 = arith.constant dense<0.000000e+00> : vector<8x128xf32>
    %18 = tpu.matmul %0, %17, %cst_24 {dimension_numbers = #tpu.dot_dimension_numbers<[1], [0], [0], [1], [0, 0, 1, 1], [], []>} : vector<8x12xf32>, vector<12x128xf32>, vector<8x128xf32> -> vector<8x128xf32>
    %19 = vector.broadcast %2 : vector<8x1xf32> to vector<8x128xf32>
    %20 = arith.addf %18, %19 : vector<8x128xf32>
    %cst_25 = arith.constant 0.000000e+00 : f32
    %21 = vector.broadcast %cst_25 : f32 to vector<8x128xf32>
    %22 = arith.maximumf %20, %21 : vector<8x128xf32>
    %23 = tpu.iota {dimensions = array<i32: 1>} : vector<8x128xi32>
    %c0_i32 = arith.constant 0 : i32
    %24 = vector.broadcast %c0_i32 : i32 to vector<8x128xi32>
    %25 = arith.addi %23, %24 : vector<8x128xi32>
    %c16_i32 = arith.constant 16 : i32
    %26 = vector.broadcast %c16_i32 : i32 to vector<8x128xi32>
    %27 = arith.cmpi slt, %25, %26 : vector<8x128xi32>
    %cst_26 = arith.constant 0.000000e+00 : f32
    %28 = vector.broadcast %cst_26 : f32 to vector<8x128xf32>
    %29 = arith.select %27, %22, %28 : vector<8x128xi1>, vector<8x128xf32>
    %c0_27 = arith.constant 0 : index
    %c1_28 = arith.constant 1 : index
    %30 = vector.load %arg8[%c0_27, %c1_28] : memref<8x256xf32, #tpu.memory_space<vmem>>, vector<8x128xf32>
    tpu.vector_store %arg8[%c0_27, %c1_28], %29 {strides = array<i32>} : memref<8x256xf32, #tpu.memory_space<vmem>>, vector<8x128xf32>,
    %c0_29 = arith.constant 0 : index
    %c0_30 = arith.constant 0 : index
    %31 = vector.load %arg8[%c0_29, %c0_30] : memref<8x256xf32, #tpu.memory_space<vmem>>, vector<8x128xf32>
    %c0_31 = arith.constant 0 : index
    %c0_32 = arith.constant 0 : index
    %32 = vector.load %arg9[%c0_31, %c0_32] : memref<24x128xf32, #tpu.memory_space<vmem>>, vector<8x128xf32>
    tpu.vector_store %arg9[%c0_31, %c0_32], %31 {strides = array<i32>} : memref<24x128xf32, #tpu.memory_space<vmem>>, vector<8x128xf32>,
    %c0_33 = arith.constant 0 : index
    %c1_34 = arith.constant 1 : index
    %33 = vector.load %arg8[%c0_33, %c1_34] : memref<8x256xf32, #tpu.memory_space<vmem>>, vector<8x128xf32>
    %c8_35 = arith.constant 8 : index
    %c0_36 = arith.constant 0 : index
    %34 = vector.load %arg9[%c8_35, %c0_36] : memref<24x128xf32, #tpu.memory_space<vmem>>, vector<8x128xf32>
    tpu.vector_store %arg9[%c8_35, %c0_36], %33 {strides = array<i32>} : memref<24x128xf32, #tpu.memory_space<vmem>>, vector<8x128xf32>,
    %c0_37 = arith.constant 0 : index
    %c2_38 = arith.constant 2 : index
    %35 = vector.load %arg8[%c0_37, %c2_38] : memref<8x256xf32, #tpu.memory_space<vmem>>, vector<8x128xf32>
    %c16 = arith.constant 16 : index
    %c0_39 = arith.constant 0 : index
    %36 = vector.load %arg9[%c16, %c0_39] : memref<24x128xf32, #tpu.memory_space<vmem>>, vector<8x128xf32>
    tpu.vector_store %arg9[%c16, %c0_39], %35 {strides = array<i32>} : memref<24x128xf32, #tpu.memory_space<vmem>>, vector<8x128xf32>,
    %c0_40 = arith.constant 0 : index
    %c0_41 = arith.constant 0 : index
    %37 = vector.load %arg9[%c0_40, %c0_41] : memref<24x128xf32, #tpu.memory_space<vmem>>, vector<24x128xf32>
    %cst_42 = arith.constant dense<0.000000e+00> : vector<8x128xf32>
    %38 = tpu.matmul %1, %37, %cst_42 {dimension_numbers = #tpu.dot_dimension_numbers<[1], [0], [0], [1], [0, 0, 1, 1], [], []>} : vector<8x24xf32>, vector<24x128xf32>, vector<8x128xf32> -> vector<8x128xf32>
    %39 = vector.broadcast %3 : vector<8x1xf32> to vector<8x128xf32>
    %40 = arith.addf %38, %39 : vector<8x128xf32>
    %cst_43 = arith.constant 0.000000e+00 : f32
    %41 = vector.broadcast %cst_43 : f32 to vector<8x128xf32>
    %42 = arith.maximumf %40, %41 : vector<8x128xf32>
    %c0_44 = arith.constant 0 : index
    %c0_45 = arith.constant 0 : index
    %c0_46 = arith.constant 0 : index
    %43 = vector.load %arg6[%c0_44, %c0_45, %c0_46] : memref<1x8x128xf32, #tpu.memory_space<vmem>>, vector<1x8x128xf32>
    %44 = vector.shape_cast %43 : vector<1x8x128xf32> to vector<8x128xf32>
    %45 = vector.shape_cast %42 : vector<8x128xf32> to vector<1x8x128xf32>
    tpu.vector_store %arg6[%c0_44, %c0_45, %c0_46], %45 {strides = array<i32>} : memref<1x8x128xf32, #tpu.memory_space<vmem>>, vector<1x8x128xf32>,
    return
  }
  func.func @transform_0(%arg0: i32) -> (i32, i32, i32) {
    %c0_i32 = arith.constant 0 : i32
    %c0_i32_0 = arith.constant 0 : i32
    %c0_i32_1 = arith.constant 0 : i32
    return %arg0, %c0_i32, %c0_i32_0 : i32, i32, i32
  }
  func.func @transform_1(%arg0: i32) -> (i32, i32) {
    %c0_i32 = arith.constant 0 : i32
    %c0_i32_0 = arith.constant 0 : i32
    %c0_i32_1 = arith.constant 0 : i32
    return %c0_i32, %c0_i32_0 : i32, i32
  }
  func.func @transform_2(%arg0: i32) -> (i32, i32) {
    %c0_i32 = arith.constant 0 : i32
    %c0_i32_0 = arith.constant 0 : i32
    %c0_i32_1 = arith.constant 0 : i32
    return %c0_i32, %c0_i32_0 : i32, i32
  }
  func.func @transform_3(%arg0: i32) -> (i32, i32) {
    %c0_i32 = arith.constant 0 : i32
    %c0_i32_0 = arith.constant 0 : i32
    %c0_i32_1 = arith.constant 0 : i32
    return %c0_i32, %c0_i32_0 : i32, i32
  }
  func.func @transform_4(%arg0: i32) -> (i32, i32) {
    %c0_i32 = arith.constant 0 : i32
    %c0_i32_0 = arith.constant 0 : i32
    %c0_i32_1 = arith.constant 0 : i32
    return %c0_i32, %c0_i32_0 : i32, i32
  }
  func.func @transform_5(%arg0: i32) -> (i32, i32, i32) {
    %c0_i32 = arith.constant 0 : i32
    %c0_i32_0 = arith.constant 0 : i32
    %c0_i32_1 = arith.constant 0 : i32
    return %arg0, %c0_i32, %c0_i32_0 : i32, i32, i32
  }
}

</mosaic_0001>

<llo_original>
// kernel: tpu_custom_call.1
$region0: #{tpu_custom_call.1}
  #allocation0 [shape = 'u32[]', space=smem, size = 0x4, offset = 0x4, fixed_abs, tag = 'smem constant byte address 0x4 - core index']
  #allocation1 [shape = 'u32[144,128]{1,0:T(1,128)}', space=vmem, size = 0x12000, scoped, tag = 'internal scratch']
  #allocation2 [shape = 'f32[12,128]{1,0:T(8,128)}', space=vmem, size = 0x2000, scoped, tag = 'scratch operand']
  #allocation3 [shape = 'f32[8,256]{1,0:T(8,128)}', space=vmem, size = 0x2000, scoped, tag = 'scratch operand']
  #allocation4 [shape = 'f32[24,128]{1,0:T(8,128)}', space=vmem, size = 0x3000, scoped, tag = 'scratch operand']
  %s0 = inlined_call_operand.vmem [shape: f32[2,4,256], index: 0, kind: input, shape index: {}]
  %s1 = inlined_call_operand.hbm [shape: f32[8,12], index: 1, kind: input, shape index: {}]
  %s2 = inlined_call_operand.vmem [shape: f32[8,1], index: 2, kind: input, shape index: {}]
  %s3 = inlined_call_operand.vmem [shape: f32[8,24], index: 3, kind: input, shape index: {}]
  %s4 = inlined_call_operand.vmem [shape: f32[8,1], index: 4, kind: input, shape index: {}]
  %s5 = inlined_call_operand.hbm [shape: f32[2,8,128], index: 5, kind: output, shape index: {}]
  %s6 = sld [smem:[#allocation0]]
  $region57: #{tpu_custom_call.1} parent=0
    _
  %s8 = ssub.s32 1, %s6
  %s9 = scalar_select 0, %s8, %s6
  $region1: #{tpu_custom_call.1} parent=0
    #allocation5 [shape = 'u8[4096]{0}', space=vmem, size = 0x1000, scoped, tag = 'input window, operand 1, single buffered']
    #allocation6 [shape = 's32[2]{0}', space=sflag, size = 0x8, scoped, tag = 'scoped memory for tpu_custom_call.1']
    #allocation7 [shape = 's32[2]{0}', space=sflag, size = 0x8, scoped, tag = 'scoped memory for tpu_custom_call.1']
    #allocation8 [shape = 'u8[8192]{0}', space=vmem, size = 0x2000, scoped, tag = 'output window, operand 0']
    %10 = vsyncpa [#allocation6], 0
    %11 = vsyncpa [#allocation7], 0
    %s12 = scalar_lea.sflag [#allocation7], 1
    %13 = vsyncpa %s12, 0
    loop: start=0, step=1, limit=4
    $region2: #{tpu_custom_call.1} parent=1 // loop_pre_header
      _
    $region3: #{tpu_custom_call.1} parent=1 // loop_header
      %s15 = sphi 0, %s19
      %p16 = scmp.ge.s32.totalorder %s15, 4
      %s25 = sphi 0, %s27
      %s28 = sphi 0, %s25
      %s29 = sphi 0, %s28
      %s45 = sphi 0, %s29
      %s49 = sphi 0, %s49
      %s51 = sphi 0, %s49
      %s52 = sphi 0, %s51
      %s66 = sphi 0, %s52
      %s70 = sphi 0, %s70
      %s72 = sphi 0, %s70
      %s73 = sphi 0, %s72
      %s87 = sphi 0, %s73
      %s91 = sphi 0, %s91
      %s93 = sphi 0, %s91
      %s94 = sphi 0, %s93
      %s108 = sphi 0, %s94
      %s112 = sphi 0, %s112
      %s114 = sphi 0, %s112
      %s115 = sphi 0, %s114
      %s129 = sphi 0, %s115
      %s135 = sphi 0, %s137
      %s138 = sphi 0, %s135
      %s139 = sphi 0, %s138
      %s155 = sphi 0, %s139
    $region4: #{tpu_custom_call.1} parent=1 // loop_header_branch
      %18 = sbr.rel (%p16) target = $region8
    $region5: #{tpu_custom_call.1} parent=1 // loop_body
      %s20 = ssub.s32 %s15, 1
      %s21 = ssub.s32 %s15, 2
      %s22 = sadd.s32 %s15, 1
      %s23 = ssub.s32 %s15, %s22
      %p24 = scmp.eq.s32.totalorder %s23, 0
      %s26 = sadd.s32 %s25, 1
      %s27 = scalar_select %p24, %s25, %s26
      %p30 = pneg %p24
      %p31 = scmp.eq.s32.totalorder %s15, 1
      %p32 = por %p30, %p31
      %p33 = scmp.ne.s32.totalorder %s25, %s28
      %p34 = scmp.eq.s32.totalorder %s15, 0
      %p35 = por %p33, %p34
      %p36 = scmp.ne.s32.totalorder %s25, %s28
      %p37 = scmp.eq.s32.totalorder %s20, 1
      %p38 = por %p36, %p37
      %p39 = scmp.ne.s32.totalorder %s28, %s29
      %p40 = scmp.eq.s32.totalorder %s20, 0
      %p41 = por %p39, %p40
      %p42 = scmp.ne.s32.totalorder %s28, %s29
      %p43 = scmp.eq.s32.totalorder %s21, 1
      %p44 = por %p42, %p43
      %p46 = scmp.ne.s32.totalorder %s29, %s45
      %p47 = scmp.eq.s32.totalorder %s21, 0
      %p48 = por %p46, %p47
      %s50 = sadd.s32 %s49, 1
      %p53 = scmp.eq.s32.totalorder %s15, 1
      %p54 = scmp.ne.s32.totalorder %s49, %s51
      %p55 = scmp.eq.s32.totalorder %s15, 0
      %p56 = por %p54, %p55
      %p57 = scmp.ne.s32.totalorder %s49, %s51
      %p58 = scmp.eq.s32.totalorder %s20, 1
      %p59 = por %p57, %p58
      %p60 = scmp.ne.s32.totalorder %s51, %s52
      %p61 = scmp.eq.s32.totalorder %s20, 0
      %p62 = por %p60, %p61
      %p63 = scmp.ne.s32.totalorder %s51, %s52
      %p64 = scmp.eq.s32.totalorder %s21, 1
      %p65 = por %p63, %p64
      %p67 = scmp.ne.s32.totalorder %s52, %s66
      %p68 = scmp.eq.s32.totalorder %s21, 0
      %p69 = por %p67, %p68
      %s71 = sadd.s32 %s70, 1
      %p74 = scmp.eq.s32.totalorder %s15, 1
      %p75 = scmp.ne.s32.totalorder %s70, %s72
      %p76 = scmp.eq.s32.totalorder %s15, 0
      %p77 = por %p75, %p76
      %p78 = scmp.ne.s32.totalorder %s70, %s72
      %p79 = scmp.eq.s32.totalorder %s20, 1
      %p80 = por %p78, %p79
      %p81 = scmp.ne.s32.totalorder %s72, %s73
      %p82 = scmp.eq.s32.totalorder %s20, 0
      %p83 = por %p81, %p82
      %p84 = scmp.ne.s32.totalorder %s72, %s73
      %p85 = scmp.eq.s32.totalorder %s21, 1
      %p86 = por %p84, %p85
      %p88 = scmp.ne.s32.totalorder %s73, %s87
      %p89 = scmp.eq.s32.totalorder %s21, 0
      %p90 = por %p88, %p89
      %s92 = sadd.s32 %s91, 1
      %p95 = scmp.eq.s32.totalorder %s15, 1
      %p96 = scmp.ne.s32.totalorder %s91, %s93
      %p97 = scmp.eq.s32.totalorder %s15, 0
      %p98 = por %p96, %p97
      %p99 = scmp.ne.s32.totalorder %s91, %s93
      %p100 = scmp.eq.s32.totalorder %s20, 1
      %p101 = por %p99, %p100
      %p102 = scmp.ne.s32.totalorder %s93, %s94
      %p103 = scmp.eq.s32.totalorder %s20, 0
      %p104 = por %p102, %p103
      %p105 = scmp.ne.s32.totalorder %s93, %s94
      %p106 = scmp.eq.s32.totalorder %s21, 1
      %p107 = por %p105, %p106
      %p109 = scmp.ne.s32.totalorder %s94, %s108
      %p110 = scmp.eq.s32.totalorder %s21, 0
      %p111 = por %p109, %p110
      %s113 = sadd.s32 %s112, 1
      %p116 = scmp.eq.s32.totalorder %s15, 1
      %p117 = scmp.ne.s32.totalorder %s112, %s114
      %p118 = scmp.eq.s32.totalorder %s15, 0
      %p119 = por %p117, %p118
      %p120 = scmp.ne.s32.totalorder %s112, %s114
      %p121 = scmp.eq.s32.totalorder %s20, 1
      %p122 = por %p120, %p121
      %p123 = scmp.ne.s32.totalorder %s114, %s115
      %p124 = scmp.eq.s32.totalorder %s20, 0
      %p125 = por %p123, %p124
      %p126 = scmp.ne.s32.totalorder %s114, %s115
      %p127 = scmp.eq.s32.totalorder %s21, 1
      %p128 = por %p126, %p127
      %p130 = scmp.ne.s32.totalorder %s115, %s129
      %p131 = scmp.eq.s32.totalorder %s21, 0
      %p132 = por %p130, %p131
      %s133 = ssub.s32 %s15, %s22
      %p134 = scmp.eq.s32.totalorder %s133, 0
      %s136 = sadd.s32 %s135, 1
      %s137 = scalar_select %p134, %s135, %s136
      %p140 = pneg %p134
      %p141 = scmp.eq.s32.totalorder %s15, 1
      %p142 = por %p140, %p141
      %p143 = scmp.ne.s32.totalorder %s135, %s138
      %p144 = scmp.eq.s32.totalorder %s15, 0
      %p145 = por %p143, %p144
      %p146 = scmp.ne.s32.totalorder %s135, %s138
      %p147 = scmp.eq.s32.totalorder %s20, 1
      %p148 = por %p146, %p147
      %p149 = scmp.ne.s32.totalorder %s138, %s139
      %p150 = scmp.eq.s32.totalorder %s20, 0
      %p151 = por %p149, %p150
      %p152 = scmp.ne.s32.totalorder %s138, %s139
      %p153 = scmp.eq.s32.totalorder %s21, 1
      %p154 = por %p152, %p153
      %p156 = scmp.ne.s32.totalorder %s139, %s155
      %p157 = scmp.eq.s32.totalorder %s21, 0
      %p158 = por %p156, %p157
      %p159 = scmp.le.s32.totalorder 1, %s15
      %p160 = scmp.lt.s32.totalorder %s15, 3
      %p161 = pnand %p159, %p160
      %p162 = pneg %p161
      // Predicated region
      $region9: #{tpu_custom_call.1} parent=5 // pred_check
        _
      $region10: #{tpu_custom_call.1} parent=5 // pred_check_branch
        %164 = sbr.rel (%p161) target = $region12
      $region11: #{tpu_custom_call.1} parent=5 // pred_region
        %s165 = ssub.s32 %s15, 1
        // Predicated region
        $region13: #{tpu_custom_call.1} parent=11 // pred_check
          %p166 = pneg %p62
        $region14: #{tpu_custom_call.1} parent=11 // pred_check_branch
          %168 = sbr.rel (%p166) target = $region16
        $region15: #{tpu_custom_call.1} parent=11 // pred_region
          %s170 = ssub.s32 128, 128
          %171 = vsyncadd [#allocation6], %s170
          %s173 = sshll.u32 [#allocation5], 4
          %s174 = int_to_ptr.vmem [resolvable:$true] %s173
          %176 = dma.hbm_to_vmem [thread:$0]  %s1, 128, %s174, [#allocation6]
        $region16: #{tpu_custom_call.1} parent=11 // pred_fallthru
          _
        // Predicated region
        $region17: #{tpu_custom_call.1} parent=11 // pred_check
          %p177 = pneg %p83
        $region18: #{tpu_custom_call.1} parent=11 // pred_check_branch
          %179 = sbr.rel (%p177) target = $region20
        $region19: #{tpu_custom_call.1} parent=11 // pred_region
          _
        $region20: #{tpu_custom_call.1} parent=11 // pred_fallthru
          _
        // Predicated region
        $region21: #{tpu_custom_call.1} parent=11 // pred_check
          %p180 = pneg %p104
        $region22: #{tpu_custom_call.1} parent=11 // pred_check_branch
          %182 = sbr.rel (%p180) target = $region24
        $region23: #{tpu_custom_call.1} parent=11 // pred_region
          _
        $region24: #{tpu_custom_call.1} parent=11 // pred_fallthru
          _
        // Predicated region
        $region25: #{tpu_custom_call.1} parent=11 // pred_check
          %p183 = pneg %p125
        $region26: #{tpu_custom_call.1} parent=11 // pred_check_branch
          %185 = sbr.rel (%p183) target = $region28
        $region27: #{tpu_custom_call.1} parent=11 // pred_region
          _
        $region28: #{tpu_custom_call.1} parent=11 // pred_fallthru
          _
      $region12: #{tpu_custom_call.1} parent=5 // pred_fallthru
        _
      %p186 = scmp.lt.s32.totalorder %s15, 2
      // Predicated region
      $region29: #{tpu_custom_call.1} parent=5 // pred_check
        %p187 = pneg %p186
      $region30: #{tpu_custom_call.1} parent=5 // pred_check_branch
        %189 = sbr.rel (%p187) target = $region32
      $region31: #{tpu_custom_call.1} parent=5 // pred_region
        // Predicated region
        $region33: #{tpu_custom_call.1} parent=31 // pred_check
          %p190 = pneg %p35
        $region34: #{tpu_custom_call.1} parent=31 // pred_check_branch
          %192 = sbr.rel (%p190) target = $region36
        $region35: #{tpu_custom_call.1} parent=31 // pred_region
          %p193 = scmp.lt.s32.totalorder %s15, 1
          %s194 = scalar_select %p193, %s15, 1
          %s195 = smul.addr %s194, 2
          %s196 = smul.addr %s195, 4
          %s197 = scalar_lea.vmem %s0, %s196
        $region36: #{tpu_custom_call.1} parent=31 // pred_fallthru
          _
      $region32: #{tpu_custom_call.1} parent=5 // pred_fallthru
        _
      %p198 = scmp.le.s32.totalorder 1, %s15
      %p199 = scmp.lt.s32.totalorder %s15, 3
      %p200 = pnand %p198, %p199
      %p201 = pneg %p200
      // Predicated region
      $region37: #{tpu_custom_call.1} parent=5 // pred_check
        _
      $region38: #{tpu_custom_call.1} parent=5 // pred_check_branch
        %203 = sbr.rel (%p200) target = $region40
      $region39: #{tpu_custom_call.1} parent=5 // pred_region
        %s204 = ssub.s32 %s15, 1
        // Predicated region
        $region41: #{tpu_custom_call.1} parent=39 // pred_check
          %p205 = pneg %p62
        $region42: #{tpu_custom_call.1} parent=39 // pred_check_branch
          %207 = sbr.rel (%p205) target = $region44
        $region43: #{tpu_custom_call.1} parent=39 // pred_region
          %208 = dma.done [#allocation6], 128
        $region44: #{tpu_custom_call.1} parent=39 // pred_fallthru
          _
        %p209 = scmp.lt.s32.totalorder %s20, 1
        %s210 = scalar_select %p209, %s20, 1
        %s211 = smul.addr %s210, 2
        %s212 = smul.addr %s211, 4
        %s213 = scalar_lea.vmem %s0, %s212
        %p214 = pneg %p41
        %p215 = pneg %p38
        %p216 = pneg %p62
        %p217 = pneg %p59
        %p218 = pneg %p83
        %p219 = pneg %p80
        %p220 = pneg %p104
        %p221 = pneg %p101
        %p222 = pneg %p125
        %p223 = pneg %p122
        %p224 = pneg %p151
        %p225 = pneg %p148
        %s226 = sand.u32 %s138, 1
        %s227 = scalar_lea.sflag [#allocation7], %s226
        %s228 = sand.u32 %s138, 1
        %s229 = smul.addr %s228, 8
        %s230 = scalar_lea.vmem [#allocation8], %s229
        %p231 = scmp.lt.s32.totalorder %s20, 1
        %s232 = scalar_select %p231, %s20, 1
        %s233 = smul.addr %s232, 2
        %s234 = smul.addr %s233, 4
        %s235 = scalar_lea.vmem %s0, %s234
        %v236 = vld [vmem:[#allocation5] sm:$0xff]
        %v237 = vld [vmem:[%s3] sm:$0xff]
        %v238 = vld [vmem:[%s2] sm:$0xff]
        %v239 = vld [vmem:[%s4] sm:$0xff]
        %vm240 = vcmask 7168
        %241 = vst.msk [vmem:[#allocation3] sm:$0xff] %vm240, 0.0
        %vm242 = vcmask 1047560
        %243 = vst.msk [vmem:[#allocation3 + $0x8] sm:$0xff] %vm242, 0.0
        %v244 = vld [vmem:[%s235] sm:$0xf]
        %245 = vst [vmem:[#allocation2] sm:$0xf] %v244
        %v246 = vld [vmem:[%s235] sm:$0xff]
        %v248 = vcombine.high %v246, %v246
        %249 = vrot.lane.b32.xlu0 %v246, 127
        %v250 = vpop.permute.xlu0 %249
        %251 = vrot.lane.b32.xlu0 %v248, 127
        %v252 = vpop.permute.xlu0 %251
        %vm253 = vcmask 1039360
        %v254 = vsel %vm253, %v250, %v252
        %256 = vst [vmem:[#allocation2 + $0x4] sm:$0xf] %v254
        %v257 = vld [vmem:[%s235] sm:$0xff]
        %v259 = vcombine.high %v257, %v257
        %260 = vrot.lane.b32.xlu0 %v257, 126
        %v261 = vpop.permute.xlu0 %260
        %262 = vrot.lane.b32.xlu0 %v259, 126
        %v263 = vpop.permute.xlu0 %262
        %vm264 = vcmask 1031168
        %v265 = vsel %vm264, %v261, %v263
        %267 = vst [vmem:[#allocation2 + $0x8] sm:$0xf] %v265
        %v268 = vld [vmem:[#allocation2] sm:$0xff]
        %v269 = vld [vmem:[#allocation2 + $0x8] sm:$0xf]
        %271 = vset.pattern.permute.xlu0 0
        %272 = vperm.xlu0 %271, %v238
        %v273 = vpop.permute.xlu0 %272
        %vm275 = vcmask 97280
        %v277 = vsel %vm275, %v236, 0
        %vm279 = vcmask 1043456
        %v281 = vsel %vm279, %v269, 0
        %283 = vmatprep.subr.mxu0 0.0
        %284 = vmatpush1.msra.mxu0 %v268
        %285 = vmatprep.subr.mxu0 0.0
        %286 = vmatpush1.msra.mxu0 %v281
        %287 = vmatprep.subr.mxu0 0.0
        %288 = vmatpush1.msra.mxu0 0.0
        %289 = vmatprep.subr.mxu0 0.0
        %290 = vmatpush1.msra.mxu0 0.0
        %291 = vmatprep.subr.mxu0 0.0
        %292 = vmatpush1.msra.mxu0 0.0
        %293 = vmatprep.subr.mxu0 0.0
        %294 = vmatpush1.msra.mxu0 0.0
        %295 = vmatprep.subr.mxu0 0.0
        %296 = vmatpush1.msra.mxu0 0.0
        %297 = vmatprep.subr.mxu0 0.0
        %298 = vmatpush1.msra.mxu0 0.0
        %299 = vmatprep.subr.mxu0 0.0
        %300 = vmatpush1.msra.mxu0 0.0
        %301 = vmatprep.subr.mxu0 0.0
        %302 = vmatpush1.msra.mxu0 0.0
        %303 = vmatprep.subr.mxu0 0.0
        %304 = vmatpush1.msra.mxu0 0.0
        %305 = vmatprep.subr.mxu0 0.0
        %306 = vmatpush1.msra.mxu0 0.0
        %307 = vmatprep.subr.mxu0 0.0
        %308 = vmatpush1.msra.mxu0 0.0
        %309 = vmatprep.subr.mxu0 0.0
        %310 = vmatpush1.msra.mxu0 0.0
        %311 = vmatprep.subr.mxu0 0.0
        %312 = vmatpush1.msra.mxu0 0.0
        %313 = vmatprep.subr.mxu0 0.0
        %314 = vmatpush1.msra.mxu0 0.0
        %315 = vmatprep.subr.mxu0 0.0
        %316 = vmatpush1.msra.mxu0 0.0
        %317 = vmatprep.subr.mxu0 0.0
        %318 = vmatpush1.msra.mxu0 0.0
        %319 = vmatprep.subr.mxu0 0.0
        %320 = vmatpush1.msra.mxu0 0.0
        %321 = vmatprep.subr.mxu0 0.0
        %322 = vmatpush1.msra.mxu0 0.0
        %323 = vmatprep.subr.mxu0 0.0
        %324 = vmatpush1.msra.mxu0 0.0
        %325 = vmatprep.subr.mxu0 0.0
        %326 = vmatpush1.msra.mxu0 0.0
        %327 = vmatprep.subr.mxu0 0.0
        %328 = vmatpush1.msra.mxu0 0.0
        %329 = vmatprep.subr.mxu0 0.0
        %330 = vmatpush1.msra.mxu0 0.0
        %331 = vmatprep.subr.mxu0 0.0
        %332 = vmatpush1.msra.mxu0 0.0
        %333 = vmatprep.subr.mxu0 0.0
        %334 = vmatpush1.msra.mxu0 0.0
        %335 = vmatprep.subr.mxu0 0.0
        %336 = vmatpush1.msra.mxu0 0.0
        %337 = vmatprep.subr.mxu0 0.0
        %338 = vmatpush1.msra.mxu0 0.0
        %339 = vmatprep.subr.mxu0 0.0
        %340 = vmatpush1.msra.mxu0 0.0
        %341 = vmatprep.subr.mxu0 0.0
        %342 = vmatpush1.msra.mxu0 0.0
        %343 = vmatprep.subr.mxu0 0.0
        %344 = vmatpush1.msra.mxu0 0.0
        %345 = vmatprep.subr.mxu0 0.0
        %346 = vmatpush1.msra.mxu0 0.0
        %347 = vmatprep.mubr.f32.mxu0 0.0
        %348 = vmatmul.mubr.f32.gmra.mrb[0].mxu0 %v277
        %v349 = vpop.f32.mrb[0].mxu0
        %v350 = vadd.f32 %v273, %v349
        %v351 = vpop.f32.mrb[0].mxu0
        %352 = vdwg.mxu0
        %v353 = vmax.f32 %v350, 0.0
        %v354 = vlaneseq
        %v355 = vand.u32 %v354, 127
        %vm356 = vcmp.lt.s32.totalorder %v355, 16
        %v357 = vsel %vm356, %v353, 0.0
        %359 = vrot.lane.b32.xlu0 %v357, 1
        %v360 = vpop.permute.xlu0 %359
        %362 = vst.msk [vmem:[#allocation3] sm:$0xff] %vm242, %v360
        %363 = vst.msk [vmem:[#allocation3 + $0x8] sm:$0xff] %vm240, %v360
        %v364 = vld [vmem:[#allocation3] sm:$0xff]
        %365 = vst [vmem:[#allocation4] sm:$0xff] %v364
        %v366 = vld [vmem:[#allocation3] sm:$0xff]
        %v367 = vld [vmem:[#allocation3 + $0x8] sm:$0xff]
        %370 = vrot.lane.b32.xlu0 %v366, 127
        %v371 = vpop.permute.xlu0 %370
        %372 = vrot.lane.b32.xlu0 %v367, 127
        %v373 = vpop.permute.xlu0 %372
        %v374 = vsel %vm253, %v371, %v373
        %376 = vst [vmem:[#allocation4 + $0x8] sm:$0xff] %v374
        %v377 = vld [vmem:[#allocation3] sm:$0xff]
        %v378 = vld [vmem:[#allocation3 + $0x8] sm:$0xff]
        %381 = vrot.lane.b32.xlu0 %v377, 126
        %v382 = vpop.permute.xlu0 %381
        %383 = vrot.lane.b32.xlu0 %v378, 126
        %v384 = vpop.permute.xlu0 %383
        %v385 = vsel %vm264, %v382, %v384
        %387 = vst [vmem:[#allocation4 + $0x10] sm:$0xff] %v385
        %v388 = vld [vmem:[#allocation4] sm:$0xff]
        %v389 = vld [vmem:[#allocation4 + $0x8] sm:$0xff]
        %v390 = vld [vmem:[#allocation4 + $0x10] sm:$0xff]
        %392 = vset.pattern.permute.xlu0 0
        %393 = vperm.xlu0 %392, %v239
        %v394 = vpop.permute.xlu0 %393
        %vm396 = vcmask 195584
        %v398 = vsel %vm396, %v237, 0
        %400 = vmatprep.subr.mxu0 0.0
        %401 = vmatpush1.msra.mxu0 %v388
        %402 = vmatprep.subr.mxu0 0.0
        %403 = vmatpush1.msra.mxu0 %v389
        %404 = vmatprep.subr.mxu0 0.0
        %405 = vmatpush1.msra.mxu0 %v390
        %406 = vmatprep.subr.mxu0 0.0
        %407 = vmatpush1.msra.mxu0 0.0
        %408 = vmatprep.subr.mxu0 0.0
        %409 = vmatpush1.msra.mxu0 0.0
        %410 = vmatprep.subr.mxu0 0.0
        %411 = vmatpush1.msra.mxu0 0.0
        %412 = vmatprep.subr.mxu0 0.0
        %413 = vmatpush1.msra.mxu0 0.0
        %414 = vmatprep.subr.mxu0 0.0
        %415 = vmatpush1.msra.mxu0 0.0
        %416 = vmatprep.subr.mxu0 0.0
        %417 = vmatpush1.msra.mxu0 0.0
        %418 = vmatprep.subr.mxu0 0.0
        %419 = vmatpush1.msra.mxu0 0.0
        %420 = vmatprep.subr.mxu0 0.0
        %421 = vmatpush1.msra.mxu0 0.0
        %422 = vmatprep.subr.mxu0 0.0
        %423 = vmatpush1.msra.mxu0 0.0
        %424 = vmatprep.subr.mxu0 0.0
        %425 = vmatpush1.msra.mxu0 0.0
        %426 = vmatprep.subr.mxu0 0.0
        %427 = vmatpush1.msra.mxu0 0.0
        %428 = vmatprep.subr.mxu0 0.0
        %429 = vmatpush1.msra.mxu0 0.0
        %430 = vmatprep.subr.mxu0 0.0
        %431 = vmatpush1.msra.mxu0 0.0
        %432 = vmatprep.subr.mxu0 0.0
        %433 = vmatpush1.msra.mxu0 0.0
        %434 = vmatprep.subr.mxu0 0.0
        %435 = vmatpush1.msra.mxu0 0.0
        %436 = vmatprep.subr.mxu0 0.0
        %437 = vmatpush1.msra.mxu0 0.0
        %438 = vmatprep.subr.mxu0 0.0
        %439 = vmatpush1.msra.mxu0 0.0
        %440 = vmatprep.subr.mxu0 0.0
        %441 = vmatpush1.msra.mxu0 0.0
        %442 = vmatprep.subr.mxu0 0.0
        %443 = vmatpush1.msra.mxu0 0.0
        %444 = vmatprep.subr.mxu0 0.0
        %445 = vmatpush1.msra.mxu0 0.0
        %446 = vmatprep.subr.mxu0 0.0
        %447 = vmatpush1.msra.mxu0 0.0
        %448 = vmatprep.subr.mxu0 0.0
        %449 = vmatpush1.msra.mxu0 0.0
        %450 = vmatprep.subr.mxu0 0.0
        %451 = vmatpush1.msra.mxu0 0.0
        %452 = vmatprep.subr.mxu0 0.0
        %453 = vmatpush1.msra.mxu0 0.0
        %454 = vmatprep.subr.mxu0 0.0
        %455 = vmatpush1.msra.mxu0 0.0
        %456 = vmatprep.subr.mxu0 0.0
        %457 = vmatpush1.msra.mxu0 0.0
        %458 = vmatprep.subr.mxu0 0.0
        %459 = vmatpush1.msra.mxu0 0.0
        %460 = vmatprep.subr.mxu0 0.0
        %461 = vmatpush1.msra.mxu0 0.0
        %462 = vmatprep.subr.mxu0 0.0
        %463 = vmatpush1.msra.mxu0 0.0
        %464 = vmatprep.mubr.f32.mxu0 0.0
        %465 = vmatmul.mubr.f32.gmra.mrb[0].mxu0 %v398
        %v466 = vpop.f32.mrb[0].mxu0
        %v467 = vadd.f32 %v394, %v466
        %v468 = vpop.f32.mrb[0].mxu0
        %469 = vdwg.mxu0
        %v470 = vmax.f32 %v467, 0.0
        %471 = vst [vmem:[%s230] sm:$0xff] %v470
        %s472 = sand.u32 %s138, 1
        %s473 = scalar_lea.sflag [#allocation7], %s472
        %s474 = sand.u32 %s138, 1
        %s475 = smul.addr %s474, 8
        %s476 = scalar_lea.vmem [#allocation8], %s475
        // Predicated region
        $region45: #{tpu_custom_call.1} parent=39 // pred_check
          %p477 = pneg %p148
        $region46: #{tpu_custom_call.1} parent=39 // pred_check_branch
          %479 = sbr.rel (%p477) target = $region48
        $region47: #{tpu_custom_call.1} parent=39 // pred_region
          %s481 = ssub.s32 128, 128
          %482 = vsyncadd %s473, %s481
          %s483 = smul.addr %s20, 128
          %s484 = scalar_lea.hbm %s5, %s483
          %s486 = sshll.u32 %s476, 4
          %s487 = int_to_ptr.vmem [resolvable:$true] %s486
          %489 = dma.vmem_to_hbm [thread:$0]  %s487, 128, %s484, %s473
        $region48: #{tpu_custom_call.1} parent=39 // pred_fallthru
          _
      $region40: #{tpu_custom_call.1} parent=5 // pred_fallthru
        _
      %p490 = scmp.le.s32.totalorder 2, %s15
      // Predicated region
      $region49: #{tpu_custom_call.1} parent=5 // pred_check
        %p491 = pneg %p490
      $region50: #{tpu_custom_call.1} parent=5 // pred_check_branch
        %493 = sbr.rel (%p491) target = $region52
      $region51: #{tpu_custom_call.1} parent=5 // pred_region
        %s494 = ssub.s32 %s15, 2
        // Predicated region
        $region53: #{tpu_custom_call.1} parent=51 // pred_check
          %p495 = pneg %p154
        $region54: #{tpu_custom_call.1} parent=51 // pred_check_branch
          %497 = sbr.rel (%p495) target = $region56
        $region55: #{tpu_custom_call.1} parent=51 // pred_region
          %s498 = sand.u32 %s139, 1
          %s499 = scalar_lea.sflag [#allocation7], %s498
          %s500 = sand.u32 %s139, 1
          %s501 = smul.addr %s500, 8
          %s502 = scalar_lea.vmem [#allocation8], %s501
          %503 = dma.done %s499, 128
        $region56: #{tpu_custom_call.1} parent=51 // pred_fallthru
          _
      $region52: #{tpu_custom_call.1} parent=5 // pred_fallthru
        _
    $region6: #{tpu_custom_call.1} parent=1 // loop_footer
      %s19 = sadd.s32 1, %s15
    $region7: #{tpu_custom_call.1} parent=1 // loop_footer_branch
      %14 = sbr.rel target = $region3
    $region8: #{tpu_custom_call.1} parent=1 // loop_exit
      _
    %504 = vsyncpa [#allocation6], 1
    %s505 = scalar_lea.sflag [#allocation6], 1
    %506 = vsyncpa %s505, 1
    %507 = vsyncpa [#allocation7], 1
    %s508 = scalar_lea.sflag [#allocation7], 1
    %509 = vsyncpa %s508, 1

// kernel: tpu_custom_call.1
$region0: #{tpu_custom_call.1}
  #allocation0 [shape = 'u32[]', space=smem, size = 0x4, offset = 0x4, fixed_abs, tag = 'smem constant byte address 0x4 - core index']
  #allocation1 [shape = 'u32[144,128]{1,0:T(1,128)}', space=vmem, size = 0x12000, scoped, tag = 'internal scratch']
  #allocation2 [shape = 'f32[12,128]{1,0:T(8,128)}', space=vmem, size = 0x2000, scoped, tag = 'scratch operand']
  #allocation3 [shape = 'f32[8,256]{1,0:T(8,128)}', space=vmem, size = 0x2000, scoped, tag = 'scratch operand']
  #allocation4 [shape = 'f32[24,128]{1,0:T(8,128)}', space=vmem, size = 0x3000, scoped, tag = 'scratch operand']
  %s0 = inlined_call_operand.vmem [shape: f32[2,4,256], index: 0, kind: input, shape index: {}]
  %s1 = inlined_call_operand.hbm [shape: f32[8,12], index: 1, kind: input, shape index: {}]
  %s2 = inlined_call_operand.vmem [shape: f32[8,1], index: 2, kind: input, shape index: {}]
  %s3 = inlined_call_operand.vmem [shape: f32[8,24], index: 3, kind: input, shape index: {}]
  %s4 = inlined_call_operand.vmem [shape: f32[8,1], index: 4, kind: input, shape index: {}]
  %s5 = inlined_call_operand.hbm [shape: f32[2,8,128], index: 5, kind: output, shape index: {}]
  %s6 = sld [smem:[#allocation0]]
  $region57: #{tpu_custom_call.1} parent=0
    _
  %s8 = ssub.s32 1, %s6
  %s9 = scalar_select 0, %s8, %s6
  $region1: #{tpu_custom_call.1} parent=0
    #allocation5 [shape = 'u8[4096]{0}', space=vmem, size = 0x1000, scoped, tag = 'input window, operand 1, single buffered']
    #allocation6 [shape = 's32[2]{0}', space=sflag, size = 0x8, scoped, tag = 'scoped memory for tpu_custom_call.1']
    #allocation7 [shape = 's32[2]{0}', space=sflag, size = 0x8, scoped, tag = 'scoped memory for tpu_custom_call.1']
    #allocation8 [shape = 'u8[8192]{0}', space=vmem, size = 0x2000, scoped, tag = 'output window, operand 0']
    %10 = vsyncpa [#allocation6], 0
    %11 = vsyncpa [#allocation7], 0
    %s12 = scalar_lea.sflag [#allocation7], 1
    %13 = vsyncpa %s12, 0
    loop: start=0, step=1, limit=4
    $region2: #{tpu_custom_call.1} parent=1 // loop_pre_header
      _
    $region3: #{tpu_custom_call.1} parent=1 // loop_header
      %s15 = sphi 0, %s19
      %p16 = scmp.ge.s32.totalorder %s15, 4
      %s25 = sphi 0, %s27
      %s28 = sphi 0, %s25
      %s29 = sphi 0, %s28
      %s45 = sphi 0, %s29
      %s49 = sphi 0, %s49
      %s51 = sphi 0, %s49
      %s52 = sphi 0, %s51
      %s66 = sphi 0, %s52
      %s70 = sphi 0, %s70
      %s72 = sphi 0, %s70
      %s73 = sphi 0, %s72
      %s87 = sphi 0, %s73
      %s91 = sphi 0, %s91
      %s93 = sphi 0, %s91
      %s94 = sphi 0, %s93
      %s108 = sphi 0, %s94
      %s112 = sphi 0, %s112
      %s114 = sphi 0, %s112
      %s115 = sphi 0, %s114
      %s129 = sphi 0, %s115
      %s135 = sphi 0, %s137
      %s138 = sphi 0, %s135
      %s139 = sphi 0, %s138
      %s155 = sphi 0, %s139
    $region4: #{tpu_custom_call.1} parent=1 // loop_header_branch
      %18 = sbr.rel (%p16) target = $region8
    $region5: #{tpu_custom_call.1} parent=1 // loop_body
      %s20 = ssub.s32 %s15, 1
      %s21 = ssub.s32 %s15, 2
      %s22 = sadd.s32 %s15, 1
      %s23 = ssub.s32 %s15, %s22
      %p24 = scmp.eq.s32.totalorder %s23, 0
      %s26 = sadd.s32 %s25, 1
      %s27 = scalar_select %p24, %s25, %s26
      %p30 = pneg %p24
      %p31 = scmp.eq.s32.totalorder %s15, 1
      %p32 = por %p30, %p31
      %p33 = scmp.ne.s32.totalorder %s25, %s28
      %p34 = scmp.eq.s32.totalorder %s15, 0
      %p35 = por %p33, %p34
      %p36 = scmp.ne.s32.totalorder %s25, %s28
      %p37 = scmp.eq.s32.totalorder %s20, 1
      %p38 = por %p36, %p37
      %p39 = scmp.ne.s32.totalorder %s28, %s29
      %p40 = scmp.eq.s32.totalorder %s20, 0
      %p41 = por %p39, %p40
      %p42 = scmp.ne.s32.totalorder %s28, %s29
      %p43 = scmp.eq.s32.totalorder %s21, 1
      %p44 = por %p42, %p43
      %p46 = scmp.ne.s32.totalorder %s29, %s45
      %p47 = scmp.eq.s32.totalorder %s21, 0
      %p48 = por %p46, %p47
      %s50 = sadd.s32 %s49, 1
      %p53 = scmp.eq.s32.totalorder %s15, 1
      %p54 = scmp.ne.s32.totalorder %s49, %s51
      %p55 = scmp.eq.s32.totalorder %s15, 0
      %p56 = por %p54, %p55
      %p57 = scmp.ne.s32.totalorder %s49, %s51
      %p58 = scmp.eq.s32.totalorder %s20, 1
      %p59 = por %p57, %p58
      %p60 = scmp.ne.s32.totalorder %s51, %s52
      %p61 = scmp.eq.s32.totalorder %s20, 0
      %p62 = por %p60, %p61
      %p63 = scmp.ne.s32.totalorder %s51, %s52
      %p64 = scmp.eq.s32.totalorder %s21, 1
      %p65 = por %p63, %p64
      %p67 = scmp.ne.s32.totalorder %s52, %s66
      %p68 = scmp.eq.s32.totalorder %s21, 0
      %p69 = por %p67, %p68
      %s71 = sadd.s32 %s70, 1
      %p74 = scmp.eq.s32.totalorder %s15, 1
      %p75 = scmp.ne.s32.totalorder %s70, %s72
      %p76 = scmp.eq.s32.totalorder %s15, 0
      %p77 = por %p75, %p76
      %p78 = scmp.ne.s32.totalorder %s70, %s72
      %p79 = scmp.eq.s32.totalorder %s20, 1
      %p80 = por %p78, %p79
      %p81 = scmp.ne.s32.totalorder %s72, %s73
      %p82 = scmp.eq.s32.totalorder %s20, 0
      %p83 = por %p81, %p82
      %p84 = scmp.ne.s32.totalorder %s72, %s73
      %p85 = scmp.eq.s32.totalorder %s21, 1
      %p86 = por %p84, %p85
      %p88 = scmp.ne.s32.totalorder %s73, %s87
      %p89 = scmp.eq.s32.totalorder %s21, 0
      %p90 = por %p88, %p89
      %s92 = sadd.s32 %s91, 1
      %p95 = scmp.eq.s32.totalorder %s15, 1
      %p96 = scmp.ne.s32.totalorder %s91, %s93
      %p97 = scmp.eq.s32.totalorder %s15, 0
      %p98 = por %p96, %p97
      %p99 = scmp.ne.s32.totalorder %s91, %s93
      %p100 = scmp.eq.s32.totalorder %s20, 1
      %p101 = por %p99, %p100
      %p102 = scmp.ne.s32.totalorder %s93, %s94
      %p103 = scmp.eq.s32.totalorder %s20, 0
      %p104 = por %p102, %p103
      %p105 = scmp.ne.s32.totalorder %s93, %s94
      %p106 = scmp.eq.s32.totalorder %s21, 1
      %p107 = por %p105, %p106
      %p109 = scmp.ne.s32.totalorder %s94, %s108
      %p110 = scmp.eq.s32.totalorder %s21, 0
      %p111 = por %p109, %p110
      %s113 = sadd.s32 %s112, 1
      %p116 = scmp.eq.s32.totalorder %s15, 1
      %p117 = scmp.ne.s32.totalorder %s112, %s114
      %p118 = scmp.eq.s32.totalorder %s15, 0
      %p119 = por %p117, %p118
      %p120 = scmp.ne.s32.totalorder %s112, %s114
      %p121 = scmp.eq.s32.totalorder %s20, 1
      %p122 = por %p120, %p121
      %p123 = scmp.ne.s32.totalorder %s114, %s115
      %p124 = scmp.eq.s32.totalorder %s20, 0
      %p125 = por %p123, %p124
      %p126 = scmp.ne.s32.totalorder %s114, %s115
      %p127 = scmp.eq.s32.totalorder %s21, 1
      %p128 = por %p126, %p127
      %p130 = scmp.ne.s32.totalorder %s115, %s129
      %p131 = scmp.eq.s32.totalorder %s21, 0
      %p132 = por %p130, %p131
      %s133 = ssub.s32 %s15, %s22
      %p134 = scmp.eq.s32.totalorder %s133, 0
      %s136 = sadd.s32 %s135, 1
      %s137 = scalar_select %p134, %s135, %s136
      %p140 = pneg %p134
      %p141 = scmp.eq.s32.totalorder %s15, 1
      %p142 = por %p140, %p141
      %p143 = scmp.ne.s32.totalorder %s135, %s138
      %p144 = scmp.eq.s32.totalorder %s15, 0
      %p145 = por %p143, %p144
      %p146 = scmp.ne.s32.totalorder %s135, %s138
      %p147 = scmp.eq.s32.totalorder %s20, 1
      %p148 = por %p146, %p147
      %p149 = scmp.ne.s32.totalorder %s138, %s139
      %p150 = scmp.eq.s32.totalorder %s20, 0
      %p151 = por %p149, %p150
      %p152 = scmp.ne.s32.totalorder %s138, %s139
      %p153 = scmp.eq.s32.totalorder %s21, 1
      %p154 = por %p152, %p153
      %p156 = scmp.ne.s32.totalorder %s139, %s155
      %p157 = scmp.eq.s32.totalorder %s21, 0
      %p158 = por %p156, %p157
      %p159 = scmp.le.s32.totalorder 1, %s15
      %p160 = scmp.lt.s32.totalorder %s15, 3
      %p161 = pnand %p159, %p160
      %p162 = pneg %p161
      // Predicated region
      $region9: #{tpu_custom_call.1} parent=5 // pred_check
        _
      $region10: #{tpu_custom_call.1} parent=5 // pred_check_branch
        %164 = sbr.rel (%p161) target = $region12
      $region11: #{tpu_custom_call.1} parent=5 // pred_region
        %s165 = ssub.s32 %s15, 1
        // Predicated region
        $region13: #{tpu_custom_call.1} parent=11 // pred_check
          %p166 = pneg %p62
        $region14: #{tpu_custom_call.1} parent=11 // pred_check_branch
          %168 = sbr.rel (%p166) target = $region16
        $region15: #{tpu_custom_call.1} parent=11 // pred_region
          %s170 = ssub.s32 128, 128
          %171 = vsyncadd [#allocation6], %s170
          %s173 = sshll.u32 [#allocation5], 4
          %s174 = int_to_ptr.vmem [resolvable:$true] %s173
          %176 = dma.hbm_to_vmem [thread:$0]  %s1, 128, %s174, [#allocation6]
        $region16: #{tpu_custom_call.1} parent=11 // pred_fallthru
          _
        // Predicated region
        $region17: #{tpu_custom_call.1} parent=11 // pred_check
          %p177 = pneg %p83
        $region18: #{tpu_custom_call.1} parent=11 // pred_check_branch
          %179 = sbr.rel (%p177) target = $region20
        $region19: #{tpu_custom_call.1} parent=11 // pred_region
          _
        $region20: #{tpu_custom_call.1} parent=11 // pred_fallthru
          _
        // Predicated region
        $region21: #{tpu_custom_call.1} parent=11 // pred_check
          %p180 = pneg %p104
        $region22: #{tpu_custom_call.1} parent=11 // pred_check_branch
          %182 = sbr.rel (%p180) target = $region24
        $region23: #{tpu_custom_call.1} parent=11 // pred_region
          _
        $region24: #{tpu_custom_call.1} parent=11 // pred_fallthru
          _
        // Predicated region
        $region25: #{tpu_custom_call.1} parent=11 // pred_check
          %p183 = pneg %p125
        $region26: #{tpu_custom_call.1} parent=11 // pred_check_branch
          %185 = sbr.rel (%p183) target = $region28
        $region27: #{tpu_custom_call.1} parent=11 // pred_region
          _
        $region28: #{tpu_custom_call.1} parent=11 // pred_fallthru
          _
      $region12: #{tpu_custom_call.1} parent=5 // pred_fallthru
        _
      %p186 = scmp.lt.s32.totalorder %s15, 2
      // Predicated region
      $region29: #{tpu_custom_call.1} parent=5 // pred_check
        %p187 = pneg %p186
      $region30: #{tpu_custom_call.1} parent=5 // pred_check_branch
        %189 = sbr.rel (%p187) target = $region32
      $region31: #{tpu_custom_call.1} parent=5 // pred_region
        // Predicated region
        $region33: #{tpu_custom_call.1} parent=31 // pred_check
          %p190 = pneg %p35
        $region34: #{tpu_custom_call.1} parent=31 // pred_check_branch
          %192 = sbr.rel (%p190) target = $region36
        $region35: #{tpu_custom_call.1} parent=31 // pred_region
          %p193 = scmp.lt.s32.totalorder %s15, 1
          %s194 = scalar_select %p193, %s15, 1
          %s195 = smul.addr %s194, 2
          %s196 = smul.addr %s195, 4
          %s197 = scalar_lea.vmem %s0, %s196
        $region36: #{tpu_custom_call.1} parent=31 // pred_fallthru
          _
      $region32: #{tpu_custom_call.1} parent=5 // pred_fallthru
        _
      %p198 = scmp.le.s32.totalorder 1, %s15
      %p199 = scmp.lt.s32.totalorder %s15, 3
      %p200 = pnand %p198, %p199
      %p201 = pneg %p200
      // Predicated region
      $region37: #{tpu_custom_call.1} parent=5 // pred_check
        _
      $region38: #{tpu_custom_call.1} parent=5 // pred_check_branch
        %203 = sbr.rel (%p200) target = $region40
      $region39: #{tpu_custom_call.1} parent=5 // pred_region
        %s204 = ssub.s32 %s15, 1
        // Predicated region
        $region41: #{tpu_custom_call.1} parent=39 // pred_check
          %p205 = pneg %p62
        $region42: #{tpu_custom_call.1} parent=39 // pred_check_branch
          %207 = sbr.rel (%p205) target = $region44
        $region43: #{tpu_custom_call.1} parent=39 // pred_region
          %208 = dma.done [#allocation6], 128
        $region44: #{tpu_custom_call.1} parent=39 // pred_fallthru
          _
        %p209 = scmp.lt.s32.totalorder %s20, 1
        %s210 = scalar_select %p209, %s20, 1
        %s211 = smul.addr %s210, 2
        %s212 = smul.addr %s211, 4
        %s213 = scalar_lea.vmem %s0, %s212
        %p214 = pneg %p41
        %p215 = pneg %p38
        %p216 = pneg %p62
        %p217 = pneg %p59
        %p218 = pneg %p83
        %p219 = pneg %p80
        %p220 = pneg %p104
        %p221 = pneg %p101
        %p222 = pneg %p125
        %p223 = pneg %p122
        %p224 = pneg %p151
        %p225 = pneg %p148
        %s226 = sand.u32 %s138, 1
        %s227 = scalar_lea.sflag [#allocation7], %s226
        %s228 = sand.u32 %s138, 1
        %s229 = smul.addr %s228, 8
        %s230 = scalar_lea.vmem [#allocation8], %s229
        %p231 = scmp.lt.s32.totalorder %s20, 1
        %s232 = scalar_select %p231, %s20, 1
        %s233 = smul.addr %s232, 2
        %s234 = smul.addr %s233, 4
        %s235 = scalar_lea.vmem %s0, %s234
        %v236 = vld [vmem:[#allocation5] sm:$0xff]
        %v237 = vld [vmem:[%s3] sm:$0xff]
        %v238 = vld [vmem:[%s2] sm:$0xff]
        %v239 = vld [vmem:[%s4] sm:$0xff]
        %vm240 = vcmask 7168
        %241 = vst.msk [vmem:[#allocation3] sm:$0xff] %vm240, 0.0
        %vm242 = vcmask 1047560
        %243 = vst.msk [vmem:[#allocation3 + $0x8] sm:$0xff] %vm242, 0.0
        %v244 = vld [vmem:[%s235] sm:$0xf]
        %245 = vst [vmem:[#allocation2] sm:$0xf] %v244
        %v246 = vld [vmem:[%s235] sm:$0xff]
        %v248 = vcombine.high %v246, %v246
        %249 = vrot.lane.b32.xlu0 %v246, 127
        %v250 = vpop.permute.xlu0 %249
        %251 = vrot.lane.b32.xlu0 %v248, 127
        %v252 = vpop.permute.xlu0 %251
        %vm253 = vcmask 1039360
        %v254 = vsel %vm253, %v250, %v252
        %256 = vst [vmem:[#allocation2 + $0x4] sm:$0xf] %v254
        %v257 = vld [vmem:[%s235] sm:$0xff]
        %v259 = vcombine.high %v257, %v257
        %260 = vrot.lane.b32.xlu0 %v257, 126
        %v261 = vpop.permute.xlu0 %260
        %262 = vrot.lane.b32.xlu0 %v259, 126
        %v263 = vpop.permute.xlu0 %262
        %vm264 = vcmask 1031168
        %v265 = vsel %vm264, %v261, %v263
        %267 = vst [vmem:[#allocation2 + $0x8] sm:$0xf] %v265
        %v268 = vld [vmem:[#allocation2] sm:$0xff]
        %v269 = vld [vmem:[#allocation2 + $0x8] sm:$0xf]
        %271 = vset.pattern.permute.xlu0 0
        %272 = vperm.xlu0 %271, %v238
        %v273 = vpop.permute.xlu0 %272
        %vm275 = vcmask 97280
        %v277 = vsel %vm275, %v236, 0
        %vm279 = vcmask 1043456
        %v281 = vsel %vm279, %v269, 0
        %283 = vmatprep.subr.mxu0 0.0
        %284 = vmatpush1.msra.mxu0 %v268
        %285 = vmatprep.subr.mxu0 0.0
        %286 = vmatpush1.msra.mxu0 %v281
        %287 = vmatprep.subr.mxu0 0.0
        %288 = vmatpush1.msra.mxu0 0.0
        %289 = vmatprep.subr.mxu0 0.0
        %290 = vmatpush1.msra.mxu0 0.0
        %291 = vmatprep.subr.mxu0 0.0
        %292 = vmatpush1.msra.mxu0 0.0
        %293 = vmatprep.subr.mxu0 0.0
        %294 = vmatpush1.msra.mxu0 0.0
        %295 = vmatprep.subr.mxu0 0.0
        %296 = vmatpush1.msra.mxu0 0.0
        %297 = vmatprep.subr.mxu0 0.0
        %298 = vmatpush1.msra.mxu0 0.0
        %299 = vmatprep.subr.mxu0 0.0
        %300 = vmatpush1.msra.mxu0 0.0
        %301 = vmatprep.subr.mxu0 0.0
        %302 = vmatpush1.msra.mxu0 0.0
        %303 = vmatprep.subr.mxu0 0.0
        %304 = vmatpush1.msra.mxu0 0.0
        %305 = vmatprep.subr.mxu0 0.0
        %306 = vmatpush1.msra.mxu0 0.0
        %307 = vmatprep.subr.mxu0 0.0
        %308 = vmatpush1.msra.mxu0 0.0
        %309 = vmatprep.subr.mxu0 0.0
        %310 = vmatpush1.msra.mxu0 0.0
        %311 = vmatprep.subr.mxu0 0.0
        %312 = vmatpush1.msra.mxu0 0.0
        %313 = vmatprep.subr.mxu0 0.0
        %314 = vmatpush1.msra.mxu0 0.0
        %315 = vmatprep.subr.mxu0 0.0
        %316 = vmatpush1.msra.mxu0 0.0
        %317 = vmatprep.subr.mxu0 0.0
        %318 = vmatpush1.msra.mxu0 0.0
        %319 = vmatprep.subr.mxu0 0.0
        %320 = vmatpush1.msra.mxu0 0.0
        %321 = vmatprep.subr.mxu0 0.0
        %322 = vmatpush1.msra.mxu0 0.0
        %323 = vmatprep.subr.mxu0 0.0
        %324 = vmatpush1.msra.mxu0 0.0
        %325 = vmatprep.subr.mxu0 0.0
        %326 = vmatpush1.msra.mxu0 0.0
        %327 = vmatprep.subr.mxu0 0.0
        %328 = vmatpush1.msra.mxu0 0.0
        %329 = vmatprep.subr.mxu0 0.0
        %330 = vmatpush1.msra.mxu0 0.0
        %331 = vmatprep.subr.mxu0 0.0
        %332 = vmatpush1.msra.mxu0 0.0
        %333 = vmatprep.subr.mxu0 0.0
        %334 = vmatpush1.msra.mxu0 0.0
        %335 = vmatprep.subr.mxu0 0.0
        %336 = vmatpush1.msra.mxu0 0.0
        %337 = vmatprep.subr.mxu0 0.0
        %338 = vmatpush1.msra.mxu0 0.0
        %339 = vmatprep.subr.mxu0 0.0
        %340 = vmatpush1.msra.mxu0 0.0
        %341 = vmatprep.subr.mxu0 0.0
        %342 = vmatpush1.msra.mxu0 0.0
        %343 = vmatprep.subr.mxu0 0.0
        %344 = vmatpush1.msra.mxu0 0.0
        %345 = vmatprep.subr.mxu0 0.0
        %346 = vmatpush1.msra.mxu0 0.0
        %347 = vmatprep.mubr.f32.mxu0 0.0
        %348 = vmatmul.mubr.f32.gmra.mrb[0].mxu0 %v277
        %v349 = vpop.f32.mrb[0].mxu0
        %v350 = vadd.f32 %v273, %v349
        %v351 = vpop.f32.mrb[0].mxu0
        %352 = vdwg.mxu0
        %v353 = vmax.f32 %v350, 0.0
        %v354 = vlaneseq
        %v355 = vand.u32 %v354, 127
        %vm356 = vcmp.lt.s32.totalorder %v355, 16
        %v357 = vsel %vm356, %v353, 0.0
        %359 = vrot.lane.b32.xlu0 %v357, 1
        %v360 = vpop.permute.xlu0 %359
        %362 = vst.msk [vmem:[#allocation3] sm:$0xff] %vm242, %v360
        %363 = vst.msk [vmem:[#allocation3 + $0x8] sm:$0xff] %vm240, %v360
        %v364 = vld [vmem:[#allocation3] sm:$0xff]
        %365 = vst [vmem:[#allocation4] sm:$0xff] %v364
        %v366 = vld [vmem:[#allocation3] sm:$0xff]
        %v367 = vld [vmem:[#allocation3 + $0x8] sm:$0xff]
        %370 = vrot.lane.b32.xlu0 %v366, 127
        %v371 = vpop.permute.xlu0 %370
        %372 = vrot.lane.b32.xlu0 %v367, 127
        %v373 = vpop.permute.xlu0 %372
        %v374 = vsel %vm253, %v371, %v373
        %376 = vst [vmem:[#allocation4 + $0x8] sm:$0xff] %v374
        %v377 = vld [vmem:[#allocation3] sm:$0xff]
        %v378 = vld [vmem:[#allocation3 + $0x8] sm:$0xff]
        %381 = vrot.lane.b32.xlu0 %v377, 126
        %v382 = vpop.permute.xlu0 %381
        %383 = vrot.lane.b32.xlu0 %v378, 126
        %v384 = vpop.permute.xlu0 %383
        %v385 = vsel %vm264, %v382, %v384
        %387 = vst [vmem:[#allocation4 + $0x10] sm:$0xff] %v385
        %v388 = vld [vmem:[#allocation4] sm:$0xff]
        %v389 = vld [vmem:[#allocation4 + $0x8] sm:$0xff]
        %v390 = vld [vmem:[#allocation4 + $0x10] sm:$0xff]
        %392 = vset.pattern.permute.xlu0 0
        %393 = vperm.xlu0 %392, %v239
        %v394 = vpop.permute.xlu0 %393
        %vm396 = vcmask 195584
        %v398 = vsel %vm396, %v237, 0
        %400 = vmatprep.subr.mxu0 0.0
        %401 = vmatpush1.msra.mxu0 %v388
        %402 = vmatprep.subr.mxu0 0.0
        %403 = vmatpush1.msra.mxu0 %v389
        %404 = vmatprep.subr.mxu0 0.0
        %405 = vmatpush1.msra.mxu0 %v390
        %406 = vmatprep.subr.mxu0 0.0
        %407 = vmatpush1.msra.mxu0 0.0
        %408 = vmatprep.subr.mxu0 0.0
        %409 = vmatpush1.msra.mxu0 0.0
        %410 = vmatprep.subr.mxu0 0.0
        %411 = vmatpush1.msra.mxu0 0.0
        %412 = vmatprep.subr.mxu0 0.0
        %413 = vmatpush1.msra.mxu0 0.0
        %414 = vmatprep.subr.mxu0 0.0
        %415 = vmatpush1.msra.mxu0 0.0
        %416 = vmatprep.subr.mxu0 0.0
        %417 = vmatpush1.msra.mxu0 0.0
        %418 = vmatprep.subr.mxu0 0.0
        %419 = vmatpush1.msra.mxu0 0.0
        %420 = vmatprep.subr.mxu0 0.0
        %421 = vmatpush1.msra.mxu0 0.0
        %422 = vmatprep.subr.mxu0 0.0
        %423 = vmatpush1.msra.mxu0 0.0
        %424 = vmatprep.subr.mxu0 0.0
        %425 = vmatpush1.msra.mxu0 0.0
        %426 = vmatprep.subr.mxu0 0.0
        %427 = vmatpush1.msra.mxu0 0.0
        %428 = vmatprep.subr.mxu0 0.0
        %429 = vmatpush1.msra.mxu0 0.0
        %430 = vmatprep.subr.mxu0 0.0
        %431 = vmatpush1.msra.mxu0 0.0
        %432 = vmatprep.subr.mxu0 0.0
        %433 = vmatpush1.msra.mxu0 0.0
        %434 = vmatprep.subr.mxu0 0.0
        %435 = vmatpush1.msra.mxu0 0.0
        %436 = vmatprep.subr.mxu0 0.0
        %437 = vmatpush1.msra.mxu0 0.0
        %438 = vmatprep.subr.mxu0 0.0
        %439 = vmatpush1.msra.mxu0 0.0
        %440 = vmatprep.subr.mxu0 0.0
        %441 = vmatpush1.msra.mxu0 0.0
        %442 = vmatprep.subr.mxu0 0.0
        %443 = vmatpush1.msra.mxu0 0.0
        %444 = vmatprep.subr.mxu0 0.0
        %445 = vmatpush1.msra.mxu0 0.0
        %446 = vmatprep.subr.mxu0 0.0
        %447 = vmatpush1.msra.mxu0 0.0
        %448 = vmatprep.subr.mxu0 0.0
        %449 = vmatpush1.msra.mxu0 0.0
        %450 = vmatprep.subr.mxu0 0.0
        %451 = vmatpush1.msra.mxu0 0.0
        %452 = vmatprep.subr.mxu0 0.0
        %453 = vmatpush1.msra.mxu0 0.0
        %454 = vmatprep.subr.mxu0 0.0
        %455 = vmatpush1.msra.mxu0 0.0
        %456 = vmatprep.subr.mxu0 0.0
        %457 = vmatpush1.msra.mxu0 0.0
        %458 = vmatprep.subr.mxu0 0.0
        %459 = vmatpush1.msra.mxu0 0.0
        %460 = vmatprep.subr.mxu0 0.0
        %461 = vmatpush1.msra.mxu0 0.0
        %462 = vmatprep.subr.mxu0 0.0
        %463 = vmatpush1.msra.mxu0 0.0
        %464 = vmatprep.mubr.f32.mxu0 0.0
        %465 = vmatmul.mubr.f32.gmra.mrb[0].mxu0 %v398
        %v466 = vpop.f32.mrb[0].mxu0
        %v467 = vadd.f32 %v394, %v466
        %v468 = vpop.f32.mrb[0].mxu0
        %469 = vdwg.mxu0
        %v470 = vmax.f32 %v467, 0.0
        %471 = vst [vmem:[%s230] sm:$0xff] %v470
        %s472 = sand.u32 %s138, 1
        %s473 = scalar_lea.sflag [#allocation7], %s472
        %s474 = sand.u32 %s138, 1
        %s475 = smul.addr %s474, 8
        %s476 = scalar_lea.vmem [#allocation8], %s475
        // Predicated region
        $region45: #{tpu_custom_call.1} parent=39 // pred_check
          %p477 = pneg %p148
        $region46: #{tpu_custom_call.1} parent=39 // pred_check_branch
          %479 = sbr.rel (%p477) target = $region48
        $region47: #{tpu_custom_call.1} parent=39 // pred_region
          %s481 = ssub.s32 128, 128
          %482 = vsyncadd %s473, %s481
          %s483 = smul.addr %s20, 128
          %s484 = scalar_lea.hbm %s5, %s483
          %s486 = sshll.u32 %s476, 4
          %s487 = int_to_ptr.vmem [resolvable:$true] %s486
          %489 = dma.vmem_to_hbm [thread:$0]  %s487, 128, %s484, %s473
        $region48: #{tpu_custom_call.1} parent=39 // pred_fallthru
          _
      $region40: #{tpu_custom_call.1} parent=5 // pred_fallthru
        _
      %p490 = scmp.le.s32.totalorder 2, %s15
      // Predicated region
      $region49: #{tpu_custom_call.1} parent=5 // pred_check
        %p491 = pneg %p490
      $region50: #{tpu_custom_call.1} parent=5 // pred_check_branch
        %493 = sbr.rel (%p491) target = $region52
      $region51: #{tpu_custom_call.1} parent=5 // pred_region
        %s494 = ssub.s32 %s15, 2
        // Predicated region
        $region53: #{tpu_custom_call.1} parent=51 // pred_check
          %p495 = pneg %p154
        $region54: #{tpu_custom_call.1} parent=51 // pred_check_branch
          %497 = sbr.rel (%p495) target = $region56
        $region55: #{tpu_custom_call.1} parent=51 // pred_region
          %s498 = sand.u32 %s139, 1
          %s499 = scalar_lea.sflag [#allocation7], %s498
          %s500 = sand.u32 %s139, 1
          %s501 = smul.addr %s500, 8
          %s502 = scalar_lea.vmem [#allocation8], %s501
          %503 = dma.done %s499, 128
        $region56: #{tpu_custom_call.1} parent=51 // pred_fallthru
          _
      $region52: #{tpu_custom_call.1} parent=5 // pred_fallthru
        _
    $region6: #{tpu_custom_call.1} parent=1 // loop_footer
      %s19 = sadd.s32 1, %s15
    $region7: #{tpu_custom_call.1} parent=1 // loop_footer_branch
      %14 = sbr.rel target = $region3
    $region8: #{tpu_custom_call.1} parent=1 // loop_exit
      _
    %504 = vsyncpa [#allocation6], 1
    %s505 = scalar_lea.sflag [#allocation6], 1
    %506 = vsyncpa %s505, 1
    %507 = vsyncpa [#allocation7], 1
    %s508 = scalar_lea.sflag [#allocation7], 1
    %509 = vsyncpa %s508, 1

</llo_original>
